<compile_context>
chip_gen: v7x
topology: tpu7x:2x2x1
jax: 0.10.0
libtpu: 0.0.40
codegen_flags: <defaults>
</compile_context>

<pallas_src>
import jax
import jax.numpy as jnp
from jax.experimental import pallas as pl
from jax.experimental.pallas import tpu as pltpu

RATIO = 16      # "ratio" in FixCaps: input channels per group
K = 9           # kernel_size
STRIDE = 2


def _conv_unit_kernel(x_ref, w_ref, b_ref, o_ref):
    # x_ref: (RATIO*4, Hp, Wp, Bt) VMEM — channel-parity planes of one group,
    #                               batch tile on the minor (lane) dim.
    # w_ref: (G*RATIO, K*K)        SMEM — full weight table, grid-resident.
    # b_ref: (G,)                  SMEM — per-group bias.
    # o_ref: (OH, OW, Bt)          VMEM — batch-on-lanes output block.
    g = pl.program_id(0)
    OH, OW, Bt = o_ref.shape
    n_parity = STRIDE * STRIDE

    def channel_body(c, acc):
        part = jnp.zeros((OH, OW, Bt), jnp.float32)
        for p in range(STRIDE):
            for q in range(STRIDE):
                # One contiguous load per (channel, parity); all taps below
                # are static slices on non-minor dims (no lane strides).
                plane = x_ref[c * n_parity + p * STRIDE + q]      # (Hp, Wp, Bt)
                for kh in range(p, K, STRIDE):
                    hs = kh // STRIDE
                    for kw in range(q, K, STRIDE):
                        ws = kw // STRIDE
                        tap = plane[hs:hs + OH, ws:ws + OW, :]
                        # SMEM scalar weight -> free VPU splat; scalar-FMA
                        # accumulate (no broadcast temporaries, no spills).
                        wk = w_ref[g * RATIO + c, kh * K + kw].astype(jnp.float32)
                        part = part + tap.astype(jnp.float32) * wk
        return acc + part

    # fori_loop (rather than a fully-unrolled Python loop over 16*81 taps)
    # bounds the live range of the parity planes and keeps the trace small.
    acc = jax.lax.fori_loop(0, RATIO, channel_body,
                            jnp.zeros((OH, OW, Bt), jnp.float32))
    o_ref[...] = (acc + b_ref[g].astype(jnp.float32)).astype(o_ref.dtype)


def conv_unit(x, weight, bias, *, b_tile=None, vmem_block_budget_bytes=8 << 20):
    """Grouped conv.  x (B, Cin, H, W), weight (G, 16, K, K), bias (G,)
    -> (B, G, OH, OW), matching nn.Conv2d(Cin, G, 9, stride=2, groups=G)."""
    B, Cin, H, W = x.shape
    assert Cin % RATIO == 0 and H >= K and W >= K
    G = Cin // RATIO
    assert weight.shape == (G, RATIO, K, K) and bias.shape == (G,)
    OH = (H - K) // STRIDE + 1
    OW = (W - K) // STRIDE + 1
    Hp = -(-H // STRIDE)          # ceil(H / 2)
    Wp = -(-W // STRIDE)

    # ---- wrapper-side layout plumbing (batch -> lanes, parity pre-split) ----
    xg = x.reshape(B, G, RATIO, H, W)
    xg = jnp.pad(xg, ((0, 0), (0, 0), (0, 0),
                      (0, STRIDE * Hp - H), (0, STRIDE * Wp - W)))
    xg = xg.reshape(B, G, RATIO, Hp, STRIDE, Wp, STRIDE)
    xg = jnp.transpose(xg, (1, 2, 4, 6, 3, 5, 0))    # (G, RATIO, ph, pw, Hp, Wp, B)
    xg = xg.reshape(G, RATIO * STRIDE * STRIDE, Hp, Wp, B)

    w_tab = weight.reshape(G * RATIO, K * K)          # SMEM scalar table

    # ---- batch tile: lane-dense (multiple of 128) or whole batch ----
    per_batch_bytes = RATIO * STRIDE * STRIDE * Hp * Wp * x.dtype.itemsize
    if b_tile is None:
        cands = [d for d in range(1, B + 1)
                 if B % d == 0 and (d == B or d % 128 == 0)]
        fitting = [d for d in cands
                   if 2 * d * per_batch_bytes <= vmem_block_budget_bytes]
        b_tile = max(fitting) if fitting else min(cands)
    assert B % b_tile == 0 and (b_tile == B or b_tile % 128 == 0)
    nb = B // b_tile

    out = pl.pallas_call(
        _conv_unit_kernel,
        out_shape=jax.ShapeDtypeStruct((G, OH, OW, B), x.dtype),
        grid_spec=pltpu.PrefetchScalarGridSpec(
            num_scalar_prefetch=0,
            grid=(G, nb),
            in_specs=[
                # one group's parity planes for b_tile images, batch on lanes
                pl.BlockSpec((None, RATIO * STRIDE * STRIDE, Hp, Wp, b_tile),
                             lambda g, b: (g, 0, 0, 0, b)),
                # whole weight table + bias resident in SMEM for all steps
                pl.BlockSpec(memory_space=pltpu.MemorySpace.SMEM),
                pl.BlockSpec(memory_space=pltpu.MemorySpace.SMEM),
            ],
            out_specs=pl.BlockSpec((None, OH, OW, b_tile),
                                   lambda g, b: (g, 0, 0, b)),
        ),
        compiler_params=pltpu.CompilerParams(
            dimension_semantics=("parallel", "parallel"),
            vmem_limit_bytes=32 * 1024 * 1024),
    )(xg, w_tab, bias)

    # (G, OH, OW, B) -> (B, G, OH, OW): layout plumbing only.
    return jnp.transpose(out, (3, 0, 1, 2))


def conv_unit_reference(x, weight, bias):
    """Pure-JAX reference (lax grouped conv) for correctness checking."""
    G = weight.shape[0]
    out = jax.lax.conv_general_dilated(
        x, weight,
        window_strides=(STRIDE, STRIDE),
        padding="VALID",
        feature_group_count=G,
        dimension_numbers=("NCHW", "OIHW", "NCHW"),
    )
    return out + bias[None, :, None, None]


if __name__ == "__main__":
    # Small shapes consistent with the module: in_channels a multiple of 16,
    # spatial >= kernel_size=9.
    B, Cin, H, W = 2, 32, 16, 16          # -> groups = out_channels = 2
    G = Cin // RATIO

    key = jax.random.PRNGKey(0)
    kx, kw, kb = jax.random.split(key, 3)

    x = jax.random.normal(kx, (B, Cin, H, W), dtype=jnp.float32)
    # weight: (out_channels, in_channels/groups, K, K) = (G, 16, 9, 9)
    weight = 0.05 * jax.random.normal(kw, (G, RATIO, K, K), dtype=jnp.float32)
    bias = 0.1 * jax.random.normal(kb, (G,), dtype=jnp.float32)

    out = jax.block_until_ready(conv_unit(x, weight, bias))
    ref = jax.block_until_ready(conv_unit_reference(x, weight, bias))

    OH = (H - K) // STRIDE + 1
    OW = (W - K) // STRIDE + 1
    assert out.shape == ref.shape == (B, G, OH, OW)
    assert jnp.allclose(out, ref, rtol=1e-4, atol=1e-4), "mismatch vs lax conv"

    print("KERNEL_OK")
</pallas_src>

<mosaic_0001>
module attributes {stable_mosaic.version = 11 : i64} {
  func.func @_conv_unit_kernel(%arg0: i32, %arg1: i32, %arg2: memref<1x64x8x8x2xf32, #tpu.memory_space<vmem>>, %arg3: memref<32x81xf32, #tpu.memory_space<smem>>, %arg4: memref<2xf32, #tpu.memory_space<smem>>, %arg5: memref<1x4x4x2xf32, #tpu.memory_space<vmem>>) attributes {dimension_semantics = [#tpu.dimension_semantics<parallel>, #tpu.dimension_semantics<parallel>], iteration_bounds = array<i64: 2, 1>, scalar_prefetch = 0 : i64, scratch_operands = 0 : i64, tpu.core_type = #tpu.core_type<tc>, window_params = [{transform_indices = @transform_0, window_bounds = array<i64: 1, 64, 8, 8, 2>}, {transform_indices = @transform_1, window_bounds = array<i64: 32, 81>}, {transform_indices = @transform_2, window_bounds = array<i64: 2>}, {transform_indices = @transform_3, window_bounds = array<i64: 1, 4, 4, 2>}]} {
    %cst = arith.constant 0.000000e+00 : f32
    %0 = vector.broadcast %cst : f32 to vector<4x4x2xf32>
    %c0_i32 = arith.constant 0 : i32
    %c16_i32 = arith.constant 16 : i32
    %1 = arith.addi %c0_i32, %c16_i32 : i32
    %c1_i32 = arith.constant 1 : i32
    %2 = scf.for %arg6 = %c0_i32 to %1 step %c1_i32 iter_args(%arg7 = %0) -> (vector<4x4x2xf32>)  : i32 {
      %cst_4 = arith.constant 0.000000e+00 : f32
      %10 = vector.broadcast %cst_4 : f32 to vector<4x4x2xf32>
      %c4_i32 = arith.constant 4 : i32
      %11 = arith.muli %arg6, %c4_i32 : i32
      %c0_i32_5 = arith.constant 0 : i32
      %12 = arith.addi %11, %c0_i32_5 : i32
      %c0_i32_6 = arith.constant 0 : i32
      %13 = arith.addi %12, %c0_i32_6 : i32
      %c0_7 = arith.constant 0 : index
      %14 = arith.index_cast %13 : i32 to index
      %c0_8 = arith.constant 0 : index
      %c0_9 = arith.constant 0 : index
      %c0_10 = arith.constant 0 : index
      %15 = vector.load %arg2[%c0_7, %14, %c0_8, %c0_9, %c0_10] : memref<1x64x8x8x2xf32, #tpu.memory_space<vmem>>, vector<1x1x8x8x2xf32>
      %16 = vector.shape_cast %15 : vector<1x1x8x8x2xf32> to vector<8x8x2xf32>
      %17 = vector.extract_strided_slice %16 {offsets = [0, 0, 0], sizes = [4, 4, 2], strides = [1, 1, 1]} : vector<8x8x2xf32> to vector<4x4x2xf32>
      %c16_i32_11 = arith.constant 16 : i32
      %18 = arith.muli %arg0, %c16_i32_11 : i32
      %19 = arith.addi %18, %arg6 : i32
      %20 = arith.index_cast %19 : i32 to index
      %c0_12 = arith.constant 0 : index
      %21 = memref.load %arg3[%20, %c0_12] : memref<32x81xf32, #tpu.memory_space<smem>>
      %22 = vector.broadcast %21 : f32 to vector<4x4x2xf32>
      %23 = arith.mulf %17, %22 : vector<4x4x2xf32>
      %24 = arith.addf %10, %23 : vector<4x4x2xf32>
      %25 = vector.extract_strided_slice %16 {offsets = [0, 1, 0], sizes = [4, 4, 2], strides = [1, 1, 1]} : vector<8x8x2xf32> to vector<4x4x2xf32>
      %c16_i32_13 = arith.constant 16 : i32
      %26 = arith.muli %arg0, %c16_i32_13 : i32
      %27 = arith.addi %26, %arg6 : i32
      %28 = arith.index_cast %27 : i32 to index
      %c2 = arith.constant 2 : index
      %29 = memref.load %arg3[%28, %c2] : memref<32x81xf32, #tpu.memory_space<smem>>
      %30 = vector.broadcast %29 : f32 to vector<4x4x2xf32>
      %31 = arith.mulf %25, %30 : vector<4x4x2xf32>
      %32 = arith.addf %24, %31 : vector<4x4x2xf32>
      %33 = vector.extract_strided_slice %16 {offsets = [0, 2, 0], sizes = [4, 4, 2], strides = [1, 1, 1]} : vector<8x8x2xf32> to vector<4x4x2xf32>
      %c16_i32_14 = arith.constant 16 : i32
      %34 = arith.muli %arg0, %c16_i32_14 : i32
      %35 = arith.addi %34, %arg6 : i32
      %36 = arith.index_cast %35 : i32 to index
      %c4 = arith.constant 4 : index
      %37 = memref.load %arg3[%36, %c4] : memref<32x81xf32, #tpu.memory_space<smem>>
      %38 = vector.broadcast %37 : f32 to vector<4x4x2xf32>
      %39 = arith.mulf %33, %38 : vector<4x4x2xf32>
      %40 = arith.addf %32, %39 : vector<4x4x2xf32>
      %41 = vector.extract_strided_slice %16 {offsets = [0, 3, 0], sizes = [4, 4, 2], strides = [1, 1, 1]} : vector<8x8x2xf32> to vector<4x4x2xf32>
      %c16_i32_15 = arith.constant 16 : i32
      %42 = arith.muli %arg0, %c16_i32_15 : i32
      %43 = arith.addi %42, %arg6 : i32
      %44 = arith.index_cast %43 : i32 to index
      %c6 = arith.constant 6 : index
      %45 = memref.load %arg3[%44, %c6] : memref<32x81xf32, #tpu.memory_space<smem>>
      %46 = vector.broadcast %45 : f32 to vector<4x4x2xf32>
      %47 = arith.mulf %41, %46 : vector<4x4x2xf32>
      %48 = arith.addf %40, %47 : vector<4x4x2xf32>
      %49 = vector.extract_strided_slice %16 {offsets = [0, 4, 0], sizes = [4, 4, 2], strides = [1, 1, 1]} : vector<8x8x2xf32> to vector<4x4x2xf32>
      %c16_i32_16 = arith.constant 16 : i32
      %50 = arith.muli %arg0, %c16_i32_16 : i32
      %51 = arith.addi %50, %arg6 : i32
      %52 = arith.index_cast %51 : i32 to index
      %c8 = arith.constant 8 : index
      %53 = memref.load %arg3[%52, %c8] : memref<32x81xf32, #tpu.memory_space<smem>>
      %54 = vector.broadcast %53 : f32 to vector<4x4x2xf32>
      %55 = arith.mulf %49, %54 : vector<4x4x2xf32>
      %56 = arith.addf %48, %55 : vector<4x4x2xf32>
      %57 = vector.extract_strided_slice %16 {offsets = [1, 0, 0], sizes = [4, 4, 2], strides = [1, 1, 1]} : vector<8x8x2xf32> to vector<4x4x2xf32>
      %c16_i32_17 = arith.constant 16 : i32
      %58 = arith.muli %arg0, %c16_i32_17 : i32
      %59 = arith.addi %58, %arg6 : i32
      %60 = arith.index_cast %59 : i32 to index
      %c18 = arith.constant 18 : index
      %61 = memref.load %arg3[%60, %c18] : memref<32x81xf32, #tpu.memory_space<smem>>
      %62 = vector.broadcast %61 : f32 to vector<4x4x2xf32>
      %63 = arith.mulf %57, %62 : vector<4x4x2xf32>
      %64 = arith.addf %56, %63 : vector<4x4x2xf32>
      %65 = vector.extract_strided_slice %16 {offsets = [1, 1, 0], sizes = [4, 4, 2], strides = [1, 1, 1]} : vector<8x8x2xf32> to vector<4x4x2xf32>
      %c16_i32_18 = arith.constant 16 : i32
      %66 = arith.muli %arg0, %c16_i32_18 : i32
      %67 = arith.addi %66, %arg6 : i32
      %68 = arith.index_cast %67 : i32 to index
      %c20 = arith.constant 20 : index
      %69 = memref.load %arg3[%68, %c20] : memref<32x81xf32, #tpu.memory_space<smem>>
      %70 = vector.broadcast %69 : f32 to vector<4x4x2xf32>
      %71 = arith.mulf %65, %70 : vector<4x4x2xf32>
      %72 = arith.addf %64, %71 : vector<4x4x2xf32>
      %73 = vector.extract_strided_slice %16 {offsets = [1, 2, 0], sizes = [4, 4, 2], strides = [1, 1, 1]} : vector<8x8x2xf32> to vector<4x4x2xf32>
      %c16_i32_19 = arith.constant 16 : i32
      %74 = arith.muli %arg0, %c16_i32_19 : i32
      %75 = arith.addi %74, %arg6 : i32
      %76 = arith.index_cast %75 : i32 to index
      %c22 = arith.constant 22 : index
      %77 = memref.load %arg3[%76, %c22] : memref<32x81xf32, #tpu.memory_space<smem>>
      %78 = vector.broadcast %77 : f32 to vector<4x4x2xf32>
      %79 = arith.mulf %73, %78 : vector<4x4x2xf32>
      %80 = arith.addf %72, %79 : vector<4x4x2xf32>
      %81 = vector.extract_strided_slice %16 {offsets = [1, 3, 0], sizes = [4, 4, 2], strides = [1, 1, 1]} : vector<8x8x2xf32> to vector<4x4x2xf32>
      %c16_i32_20 = arith.constant 16 : i32
      %82 = arith.muli %arg0, %c16_i32_20 : i32
      %83 = arith.addi %82, %arg6 : i32
      %84 = arith.index_cast %83 : i32 to index
      %c24 = arith.constant 24 : index
      %85 = memref.load %arg3[%84, %c24] : memref<32x81xf32, #tpu.memory_space<smem>>
      %86 = vector.broadcast %85 : f32 to vector<4x4x2xf32>
      %87 = arith.mulf %81, %86 : vector<4x4x2xf32>
      %88 = arith.addf %80, %87 : vector<4x4x2xf32>
      %89 = vector.extract_strided_slice %16 {offsets = [1, 4, 0], sizes = [4, 4, 2], strides = [1, 1, 1]} : vector<8x8x2xf32> to vector<4x4x2xf32>
      %c16_i32_21 = arith.constant 16 : i32
      %90 = arith.muli %arg0, %c16_i32_21 : i32
      %91 = arith.addi %90, %arg6 : i32
      %92 = arith.index_cast %91 : i32 to index
      %c26 = arith.constant 26 : index
      %93 = memref.load %arg3[%92, %c26] : memref<32x81xf32, #tpu.memory_space<smem>>
      %94 = vector.broadcast %93 : f32 to vector<4x4x2xf32>
      %95 = arith.mulf %89, %94 : vector<4x4x2xf32>
      %96 = arith.addf %88, %95 : vector<4x4x2xf32>
      %97 = vector.extract_strided_slice %16 {offsets = [2, 0, 0], sizes = [4, 4, 2], strides = [1, 1, 1]} : vector<8x8x2xf32> to vector<4x4x2xf32>
      %c16_i32_22 = arith.constant 16 : i32
      %98 = arith.muli %arg0, %c16_i32_22 : i32
      %99 = arith.addi %98, %arg6 : i32
      %100 = arith.index_cast %99 : i32 to index
      %c36 = arith.constant 36 : index
      %101 = memref.load %arg3[%100, %c36] : memref<32x81xf32, #tpu.memory_space<smem>>
      %102 = vector.broadcast %101 : f32 to vector<4x4x2xf32>
      %103 = arith.mulf %97, %102 : vector<4x4x2xf32>
      %104 = arith.addf %96, %103 : vector<4x4x2xf32>
      %105 = vector.extract_strided_slice %16 {offsets = [2, 1, 0], sizes = [4, 4, 2], strides = [1, 1, 1]} : vector<8x8x2xf32> to vector<4x4x2xf32>
      %c16_i32_23 = arith.constant 16 : i32
      %106 = arith.muli %arg0, %c16_i32_23 : i32
      %107 = arith.addi %106, %arg6 : i32
      %108 = arith.index_cast %107 : i32 to index
      %c38 = arith.constant 38 : index
      %109 = memref.load %arg3[%108, %c38] : memref<32x81xf32, #tpu.memory_space<smem>>
      %110 = vector.broadcast %109 : f32 to vector<4x4x2xf32>
      %111 = arith.mulf %105, %110 : vector<4x4x2xf32>
      %112 = arith.addf %104, %111 : vector<4x4x2xf32>
      %113 = vector.extract_strided_slice %16 {offsets = [2, 2, 0], sizes = [4, 4, 2], strides = [1, 1, 1]} : vector<8x8x2xf32> to vector<4x4x2xf32>
      %c16_i32_24 = arith.constant 16 : i32
      %114 = arith.muli %arg0, %c16_i32_24 : i32
      %115 = arith.addi %114, %arg6 : i32
      %116 = arith.index_cast %115 : i32 to index
      %c40 = arith.constant 40 : index
      %117 = memref.load %arg3[%116, %c40] : memref<32x81xf32, #tpu.memory_space<smem>>
      %118 = vector.broadcast %117 : f32 to vector<4x4x2xf32>
      %119 = arith.mulf %113, %118 : vector<4x4x2xf32>
      %120 = arith.addf %112, %119 : vector<4x4x2xf32>
      %121 = vector.extract_strided_slice %16 {offsets = [2, 3, 0], sizes = [4, 4, 2], strides = [1, 1, 1]} : vector<8x8x2xf32> to vector<4x4x2xf32>
      %c16_i32_25 = arith.constant 16 : i32
      %122 = arith.muli %arg0, %c16_i32_25 : i32
      %123 = arith.addi %122, %arg6 : i32
      %124 = arith.index_cast %123 : i32 to index
      %c42 = arith.constant 42 : index
      %125 = memref.load %arg3[%124, %c42] : memref<32x81xf32, #tpu.memory_space<smem>>
      %126 = vector.broadcast %125 : f32 to vector<4x4x2xf32>
      %127 = arith.mulf %121, %126 : vector<4x4x2xf32>
      %128 = arith.addf %120, %127 : vector<4x4x2xf32>
      %129 = vector.extract_strided_slice %16 {offsets = [2, 4, 0], sizes = [4, 4, 2], strides = [1, 1, 1]} : vector<8x8x2xf32> to vector<4x4x2xf32>
      %c16_i32_26 = arith.constant 16 : i32
      %130 = arith.muli %arg0, %c16_i32_26 : i32
      %131 = arith.addi %130, %arg6 : i32
      %132 = arith.index_cast %131 : i32 to index
      %c44 = arith.constant 44 : index
      %133 = memref.load %arg3[%132, %c44] : memref<32x81xf32, #tpu.memory_space<smem>>
      %134 = vector.broadcast %133 : f32 to vector<4x4x2xf32>
      %135 = arith.mulf %129, %134 : vector<4x4x2xf32>
      %136 = arith.addf %128, %135 : vector<4x4x2xf32>
      %137 = vector.extract_strided_slice %16 {offsets = [3, 0, 0], sizes = [4, 4, 2], strides = [1, 1, 1]} : vector<8x8x2xf32> to vector<4x4x2xf32>
      %c16_i32_27 = arith.constant 16 : i32
      %138 = arith.muli %arg0, %c16_i32_27 : i32
      %139 = arith.addi %138, %arg6 : i32
      %140 = arith.index_cast %139 : i32 to index
      %c54 = arith.constant 54 : index
      %141 = memref.load %arg3[%140, %c54] : memref<32x81xf32, #tpu.memory_space<smem>>
      %142 = vector.broadcast %141 : f32 to vector<4x4x2xf32>
      %143 = arith.mulf %137, %142 : vector<4x4x2xf32>
      %144 = arith.addf %136, %143 : vector<4x4x2xf32>
      %145 = vector.extract_strided_slice %16 {offsets = [3, 1, 0], sizes = [4, 4, 2], strides = [1, 1, 1]} : vector<8x8x2xf32> to vector<4x4x2xf32>
      %c16_i32_28 = arith.constant 16 : i32
      %146 = arith.muli %arg0, %c16_i32_28 : i32
      %147 = arith.addi %146, %arg6 : i32
      %148 = arith.index_cast %147 : i32 to index
      %c56 = arith.constant 56 : index
      %149 = memref.load %arg3[%148, %c56] : memref<32x81xf32, #tpu.memory_space<smem>>
      %150 = vector.broadcast %149 : f32 to vector<4x4x2xf32>
      %151 = arith.mulf %145, %150 : vector<4x4x2xf32>
      %152 = arith.addf %144, %151 : vector<4x4x2xf32>
      %153 = vector.extract_strided_slice %16 {offsets = [3, 2, 0], sizes = [4, 4, 2], strides = [1, 1, 1]} : vector<8x8x2xf32> to vector<4x4x2xf32>
      %c16_i32_29 = arith.constant 16 : i32
      %154 = arith.muli %arg0, %c16_i32_29 : i32
      %155 = arith.addi %154, %arg6 : i32
      %156 = arith.index_cast %155 : i32 to index
      %c58 = arith.constant 58 : index
      %157 = memref.load %arg3[%156, %c58] : memref<32x81xf32, #tpu.memory_space<smem>>
      %158 = vector.broadcast %157 : f32 to vector<4x4x2xf32>
      %159 = arith.mulf %153, %158 : vector<4x4x2xf32>
      %160 = arith.addf %152, %159 : vector<4x4x2xf32>
      %161 = vector.extract_strided_slice %16 {offsets = [3, 3, 0], sizes = [4, 4, 2], strides = [1, 1, 1]} : vector<8x8x2xf32> to vector<4x4x2xf32>
      %c16_i32_30 = arith.constant 16 : i32
      %162 = arith.muli %arg0, %c16_i32_30 : i32
      %163 = arith.addi %162, %arg6 : i32
      %164 = arith.index_cast %163 : i32 to index
      %c60 = arith.constant 60 : index
      %165 = memref.load %arg3[%164, %c60] : memref<32x81xf32, #tpu.memory_space<smem>>
      %166 = vector.broadcast %165 : f32 to vector<4x4x2xf32>
      %167 = arith.mulf %161, %166 : vector<4x4x2xf32>
      %168 = arith.addf %160, %167 : vector<4x4x2xf32>
      %169 = vector.extract_strided_slice %16 {offsets = [3, 4, 0], sizes = [4, 4, 2], strides = [1, 1, 1]} : vector<8x8x2xf32> to vector<4x4x2xf32>
      %c16_i32_31 = arith.constant 16 : i32
      %170 = arith.muli %arg0, %c16_i32_31 : i32
      %171 = arith.addi %170, %arg6 : i32
      %172 = arith.index_cast %171 : i32 to index
      %c62 = arith.constant 62 : index
      %173 = memref.load %arg3[%172, %c62] : memref<32x81xf32, #tpu.memory_space<smem>>
      %174 = vector.broadcast %173 : f32 to vector<4x4x2xf32>
      %175 = arith.mulf %169, %174 : vector<4x4x2xf32>
      %176 = arith.addf %168, %175 : vector<4x4x2xf32>
      %177 = vector.extract_strided_slice %16 {offsets = [4, 0, 0], sizes = [4, 4, 2], strides = [1, 1, 1]} : vector<8x8x2xf32> to vector<4x4x2xf32>
      %c16_i32_32 = arith.constant 16 : i32
      %178 = arith.muli %arg0, %c16_i32_32 : i32
      %179 = arith.addi %178, %arg6 : i32
      %180 = arith.index_cast %179 : i32 to index
      %c72 = arith.constant 72 : index
      %181 = memref.load %arg3[%180, %c72] : memref<32x81xf32, #tpu.memory_space<smem>>
      %182 = vector.broadcast %181 : f32 to vector<4x4x2xf32>
      %183 = arith.mulf %177, %182 : vector<4x4x2xf32>
      %184 = arith.addf %176, %183 : vector<4x4x2xf32>
      %185 = vector.extract_strided_slice %16 {offsets = [4, 1, 0], sizes = [4, 4, 2], strides = [1, 1, 1]} : vector<8x8x2xf32> to vector<4x4x2xf32>
      %c16_i32_33 = arith.constant 16 : i32
      %186 = arith.muli %arg0, %c16_i32_33 : i32
      %187 = arith.addi %186, %arg6 : i32
      %188 = arith.index_cast %187 : i32 to index
      %c74 = arith.constant 74 : index
      %189 = memref.load %arg3[%188, %c74] : memref<32x81xf32, #tpu.memory_space<smem>>
      %190 = vector.broadcast %189 : f32 to vector<4x4x2xf32>
      %191 = arith.mulf %185, %190 : vector<4x4x2xf32>
      %192 = arith.addf %184, %191 : vector<4x4x2xf32>
      %193 = vector.extract_strided_slice %16 {offsets = [4, 2, 0], sizes = [4, 4, 2], strides = [1, 1, 1]} : vector<8x8x2xf32> to vector<4x4x2xf32>
      %c16_i32_34 = arith.constant 16 : i32
      %194 = arith.muli %arg0, %c16_i32_34 : i32
      %195 = arith.addi %194, %arg6 : i32
      %196 = arith.index_cast %195 : i32 to index
      %c76 = arith.constant 76 : index
      %197 = memref.load %arg3[%196, %c76] : memref<32x81xf32, #tpu.memory_space<smem>>
      %198 = vector.broadcast %197 : f32 to vector<4x4x2xf32>
      %199 = arith.mulf %193, %198 : vector<4x4x2xf32>
      %200 = arith.addf %192, %199 : vector<4x4x2xf32>
      %201 = vector.extract_strided_slice %16 {offsets = [4, 3, 0], sizes = [4, 4, 2], strides = [1, 1, 1]} : vector<8x8x2xf32> to vector<4x4x2xf32>
      %c16_i32_35 = arith.constant 16 : i32
      %202 = arith.muli %arg0, %c16_i32_35 : i32
      %203 = arith.addi %202, %arg6 : i32
      %204 = arith.index_cast %203 : i32 to index
      %c78 = arith.constant 78 : index
      %205 = memref.load %arg3[%204, %c78] : memref<32x81xf32, #tpu.memory_space<smem>>
      %206 = vector.broadcast %205 : f32 to vector<4x4x2xf32>
      %207 = arith.mulf %201, %206 : vector<4x4x2xf32>
      %208 = arith.addf %200, %207 : vector<4x4x2xf32>
      %209 = vector.extract_strided_slice %16 {offsets = [4, 4, 0], sizes = [4, 4, 2], strides = [1, 1, 1]} : vector<8x8x2xf32> to vector<4x4x2xf32>
      %c16_i32_36 = arith.constant 16 : i32
      %210 = arith.muli %arg0, %c16_i32_36 : i32
      %211 = arith.addi %210, %arg6 : i32
      %212 = arith.index_cast %211 : i32 to index
      %c80 = arith.constant 80 : index
      %213 = memref.load %arg3[%212, %c80] : memref<32x81xf32, #tpu.memory_space<smem>>
      %214 = vector.broadcast %213 : f32 to vector<4x4x2xf32>
      %215 = arith.mulf %209, %214 : vector<4x4x2xf32>
      %216 = arith.addf %208, %215 : vector<4x4x2xf32>
      %c4_i32_37 = arith.constant 4 : i32
      %217 = arith.muli %arg6, %c4_i32_37 : i32
      %c0_i32_38 = arith.constant 0 : i32
      %218 = arith.addi %217, %c0_i32_38 : i32
      %c1_i32_39 = arith.constant 1 : i32
      %219 = arith.addi %218, %c1_i32_39 : i32
      %c0_40 = arith.constant 0 : index
      %220 = arith.index_cast %219 : i32 to index
      %c0_41 = arith.constant 0 : index
      %c0_42 = arith.constant 0 : index
      %c0_43 = arith.constant 0 : index
      %221 = vector.load %arg2[%c0_40, %220, %c0_41, %c0_42, %c0_43] : memref<1x64x8x8x2xf32, #tpu.memory_space<vmem>>, vector<1x1x8x8x2xf32>
      %222 = vector.shape_cast %221 : vector<1x1x8x8x2xf32> to vector<8x8x2xf32>
      %223 = vector.extract_strided_slice %222 {offsets = [0, 0, 0], sizes = [4, 4, 2], strides = [1, 1, 1]} : vector<8x8x2xf32> to vector<4x4x2xf32>
      %c16_i32_44 = arith.constant 16 : i32
      %224 = arith.muli %arg0, %c16_i32_44 : i32
      %225 = arith.addi %224, %arg6 : i32
      %226 = arith.index_cast %225 : i32 to index
      %c1 = arith.constant 1 : index
      %227 = memref.load %arg3[%226, %c1] : memref<32x81xf32, #tpu.memory_space<smem>>
      %228 = vector.broadcast %227 : f32 to vector<4x4x2xf32>
      %229 = arith.mulf %223, %228 : vector<4x4x2xf32>
      %230 = arith.addf %216, %229 : vector<4x4x2xf32>
      %231 = vector.extract_strided_slice %222 {offsets = [0, 1, 0], sizes = [4, 4, 2], strides = [1, 1, 1]} : vector<8x8x2xf32> to vector<4x4x2xf32>
      %c16_i32_45 = arith.constant 16 : i32
      %232 = arith.muli %arg0, %c16_i32_45 : i32
      %233 = arith.addi %232, %arg6 : i32
      %234 = arith.index_cast %233 : i32 to index
      %c3 = arith.constant 3 : index
      %235 = memref.load %arg3[%234, %c3] : memref<32x81xf32, #tpu.memory_space<smem>>
      %236 = vector.broadcast %235 : f32 to vector<4x4x2xf32>
      %237 = arith.mulf %231, %236 : vector<4x4x2xf32>
      %238 = arith.addf %230, %237 : vector<4x4x2xf32>
      %239 = vector.extract_strided_slice %222 {offsets = [0, 2, 0], sizes = [4, 4, 2], strides = [1, 1, 1]} : vector<8x8x2xf32> to vector<4x4x2xf32>
      %c16_i32_46 = arith.constant 16 : i32
      %240 = arith.muli %arg0, %c16_i32_46 : i32
      %241 = arith.addi %240, %arg6 : i32
      %242 = arith.index_cast %241 : i32 to index
      %c5 = arith.constant 5 : index
      %243 = memref.load %arg3[%242, %c5] : memref<32x81xf32, #tpu.memory_space<smem>>
      %244 = vector.broadcast %243 : f32 to vector<4x4x2xf32>
      %245 = arith.mulf %239, %244 : vector<4x4x2xf32>
      %246 = arith.addf %238, %245 : vector<4x4x2xf32>
      %247 = vector.extract_strided_slice %222 {offsets = [0, 3, 0], sizes = [4, 4, 2], strides = [1, 1, 1]} : vector<8x8x2xf32> to vector<4x4x2xf32>
      %c16_i32_47 = arith.constant 16 : i32
      %248 = arith.muli %arg0, %c16_i32_47 : i32
      %249 = arith.addi %248, %arg6 : i32
      %250 = arith.index_cast %249 : i32 to index
      %c7 = arith.constant 7 : index
      %251 = memref.load %arg3[%250, %c7] : memref<32x81xf32, #tpu.memory_space<smem>>
      %252 = vector.broadcast %251 : f32 to vector<4x4x2xf32>
      %253 = arith.mulf %247, %252 : vector<4x4x2xf32>
      %254 = arith.addf %246, %253 : vector<4x4x2xf32>
      %255 = vector.extract_strided_slice %222 {offsets = [1, 0, 0], sizes = [4, 4, 2], strides = [1, 1, 1]} : vector<8x8x2xf32> to vector<4x4x2xf32>
      %c16_i32_48 = arith.constant 16 : i32
      %256 = arith.muli %arg0, %c16_i32_48 : i32
      %257 = arith.addi %256, %arg6 : i32
      %258 = arith.index_cast %257 : i32 to index
      %c19 = arith.constant 19 : index
      %259 = memref.load %arg3[%258, %c19] : memref<32x81xf32, #tpu.memory_space<smem>>
      %260 = vector.broadcast %259 : f32 to vector<4x4x2xf32>
      %261 = arith.mulf %255, %260 : vector<4x4x2xf32>
      %262 = arith.addf %254, %261 : vector<4x4x2xf32>
      %263 = vector.extract_strided_slice %222 {offsets = [1, 1, 0], sizes = [4, 4, 2], strides = [1, 1, 1]} : vector<8x8x2xf32> to vector<4x4x2xf32>
      %c16_i32_49 = arith.constant 16 : i32
      %264 = arith.muli %arg0, %c16_i32_49 : i32
      %265 = arith.addi %264, %arg6 : i32
      %266 = arith.index_cast %265 : i32 to index
      %c21 = arith.constant 21 : index
      %267 = memref.load %arg3[%266, %c21] : memref<32x81xf32, #tpu.memory_space<smem>>
      %268 = vector.broadcast %267 : f32 to vector<4x4x2xf32>
      %269 = arith.mulf %263, %268 : vector<4x4x2xf32>
      %270 = arith.addf %262, %269 : vector<4x4x2xf32>
      %271 = vector.extract_strided_slice %222 {offsets = [1, 2, 0], sizes = [4, 4, 2], strides = [1, 1, 1]} : vector<8x8x2xf32> to vector<4x4x2xf32>
      %c16_i32_50 = arith.constant 16 : i32
      %272 = arith.muli %arg0, %c16_i32_50 : i32
      %273 = arith.addi %272, %arg6 : i32
      %274 = arith.index_cast %273 : i32 to index
      %c23 = arith.constant 23 : index
      %275 = memref.load %arg3[%274, %c23] : memref<32x81xf32, #tpu.memory_space<smem>>
      %276 = vector.broadcast %275 : f32 to vector<4x4x2xf32>
      %277 = arith.mulf %271, %276 : vector<4x4x2xf32>
      %278 = arith.addf %270, %277 : vector<4x4x2xf32>
      %279 = vector.extract_strided_slice %222 {offsets = [1, 3, 0], sizes = [4, 4, 2], strides = [1, 1, 1]} : vector<8x8x2xf32> to vector<4x4x2xf32>
      %c16_i32_51 = arith.constant 16 : i32
      %280 = arith.muli %arg0, %c16_i32_51 : i32
      %281 = arith.addi %280, %arg6 : i32
      %282 = arith.index_cast %281 : i32 to index
      %c25 = arith.constant 25 : index
      %283 = memref.load %arg3[%282, %c25] : memref<32x81xf32, #tpu.memory_space<smem>>
      %284 = vector.broadcast %283 : f32 to vector<4x4x2xf32>
      %285 = arith.mulf %279, %284 : vector<4x4x2xf32>
      %286 = arith.addf %278, %285 : vector<4x4x2xf32>
      %287 = vector.extract_strided_slice %222 {offsets = [2, 0, 0], sizes = [4, 4, 2], strides = [1, 1, 1]} : vector<8x8x2xf32> to vector<4x4x2xf32>
      %c16_i32_52 = arith.constant 16 : i32
      %288 = arith.muli %arg0, %c16_i32_52 : i32
      %289 = arith.addi %288, %arg6 : i32
      %290 = arith.index_cast %289 : i32 to index
      %c37 = arith.constant 37 : index
      %291 = memref.load %arg3[%290, %c37] : memref<32x81xf32, #tpu.memory_space<smem>>
      %292 = vector.broadcast %291 : f32 to vector<4x4x2xf32>
      %293 = arith.mulf %287, %292 : vector<4x4x2xf32>
      %294 = arith.addf %286, %293 : vector<4x4x2xf32>
      %295 = vector.extract_strided_slice %222 {offsets = [2, 1, 0], sizes = [4, 4, 2], strides = [1, 1, 1]} : vector<8x8x2xf32> to vector<4x4x2xf32>
      %c16_i32_53 = arith.constant 16 : i32
      %296 = arith.muli %arg0, %c16_i32_53 : i32
      %297 = arith.addi %296, %arg6 : i32
      %298 = arith.index_cast %297 : i32 to index
      %c39 = arith.constant 39 : index
      %299 = memref.load %arg3[%298, %c39] : memref<32x81xf32, #tpu.memory_space<smem>>
      %300 = vector.broadcast %299 : f32 to vector<4x4x2xf32>
      %301 = arith.mulf %295, %300 : vector<4x4x2xf32>
      %302 = arith.addf %294, %301 : vector<4x4x2xf32>
      %303 = vector.extract_strided_slice %222 {offsets = [2, 2, 0], sizes = [4, 4, 2], strides = [1, 1, 1]} : vector<8x8x2xf32> to vector<4x4x2xf32>
      %c16_i32_54 = arith.constant 16 : i32
      %304 = arith.muli %arg0, %c16_i32_54 : i32
      %305 = arith.addi %304, %arg6 : i32
      %306 = arith.index_cast %305 : i32 to index
      %c41 = arith.constant 41 : index
      %307 = memref.load %arg3[%306, %c41] : memref<32x81xf32, #tpu.memory_space<smem>>
      %308 = vector.broadcast %307 : f32 to vector<4x4x2xf32>
      %309 = arith.mulf %303, %308 : vector<4x4x2xf32>
      %310 = arith.addf %302, %309 : vector<4x4x2xf32>
      %311 = vector.extract_strided_slice %222 {offsets = [2, 3, 0], sizes = [4, 4, 2], strides = [1, 1, 1]} : vector<8x8x2xf32> to vector<4x4x2xf32>
      %c16_i32_55 = arith.constant 16 : i32
      %312 = arith.muli %arg0, %c16_i32_55 : i32
      %313 = arith.addi %312, %arg6 : i32
      %314 = arith.index_cast %313 : i32 to index
      %c43 = arith.constant 43 : index
      %315 = memref.load %arg3[%314, %c43] : memref<32x81xf32, #tpu.memory_space<smem>>
      %316 = vector.broadcast %315 : f32 to vector<4x4x2xf32>
      %317 = arith.mulf %311, %316 : vector<4x4x2xf32>
      %318 = arith.addf %310, %317 : vector<4x4x2xf32>
      %319 = vector.extract_strided_slice %222 {offsets = [3, 0, 0], sizes = [4, 4, 2], strides = [1, 1, 1]} : vector<8x8x2xf32> to vector<4x4x2xf32>
      %c16_i32_56 = arith.constant 16 : i32
      %320 = arith.muli %arg0, %c16_i32_56 : i32
      %321 = arith.addi %320, %arg6 : i32
      %322 = arith.index_cast %321 : i32 to index
      %c55 = arith.constant 55 : index
      %323 = memref.load %arg3[%322, %c55] : memref<32x81xf32, #tpu.memory_space<smem>>
      %324 = vector.broadcast %323 : f32 to vector<4x4x2xf32>
      %325 = arith.mulf %319, %324 : vector<4x4x2xf32>
      %326 = arith.addf %318, %325 : vector<4x4x2xf32>
      %327 = vector.extract_strided_slice %222 {offsets = [3, 1, 0], sizes = [4, 4, 2], strides = [1, 1, 1]} : vector<8x8x2xf32> to vector<4x4x2xf32>
      %c16_i32_57 = arith.constant 16 : i32
      %328 = arith.muli %arg0, %c16_i32_57 : i32
      %329 = arith.addi %328, %arg6 : i32
      %330 = arith.index_cast %329 : i32 to index
      %c57 = arith.constant 57 : index
      %331 = memref.load %arg3[%330, %c57] : memref<32x81xf32, #tpu.memory_space<smem>>
      %332 = vector.broadcast %331 : f32 to vector<4x4x2xf32>
      %333 = arith.mulf %327, %332 : vector<4x4x2xf32>
      %334 = arith.addf %326, %333 : vector<4x4x2xf32>
      %335 = vector.extract_strided_slice %222 {offsets = [3, 2, 0], sizes = [4, 4, 2], strides = [1, 1, 1]} : vector<8x8x2xf32> to vector<4x4x2xf32>
      %c16_i32_58 = arith.constant 16 : i32
      %336 = arith.muli %arg0, %c16_i32_58 : i32
      %337 = arith.addi %336, %arg6 : i32
      %338 = arith.index_cast %337 : i32 to index
      %c59 = arith.constant 59 : index
      %339 = memref.load %arg3[%338, %c59] : memref<32x81xf32, #tpu.memory_space<smem>>
      %340 = vector.broadcast %339 : f32 to vector<4x4x2xf32>
      %341 = arith.mulf %335, %340 : vector<4x4x2xf32>
      %342 = arith.addf %334, %341 : vector<4x4x2xf32>
      %343 = vector.extract_strided_slice %222 {offsets = [3, 3, 0], sizes = [4, 4, 2], strides = [1, 1, 1]} : vector<8x8x2xf32> to vector<4x4x2xf32>
      %c16_i32_59 = arith.constant 16 : i32
      %344 = arith.muli %arg0, %c16_i32_59 : i32
      %345 = arith.addi %344, %arg6 : i32
      %346 = arith.index_cast %345 : i32 to index
      %c61 = arith.constant 61 : index
      %347 = memref.load %arg3[%346, %c61] : memref<32x81xf32, #tpu.memory_space<smem>>
      %348 = vector.broadcast %347 : f32 to vector<4x4x2xf32>
      %349 = arith.mulf %343, %348 : vector<4x4x2xf32>
      %350 = arith.addf %342, %349 : vector<4x4x2xf32>
      %351 = vector.extract_strided_slice %222 {offsets = [4, 0, 0], sizes = [4, 4, 2], strides = [1, 1, 1]} : vector<8x8x2xf32> to vector<4x4x2xf32>
      %c16_i32_60 = arith.constant 16 : i32
      %352 = arith.muli %arg0, %c16_i32_60 : i32
      %353 = arith.addi %352, %arg6 : i32
      %354 = arith.index_cast %353 : i32 to index
      %c73 = arith.constant 73 : index
      %355 = memref.load %arg3[%354, %c73] : memref<32x81xf32, #tpu.memory_space<smem>>
      %356 = vector.broadcast %355 : f32 to vector<4x4x2xf32>
      %357 = arith.mulf %351, %356 : vector<4x4x2xf32>
      %358 = arith.addf %350, %357 : vector<4x4x2xf32>
      %359 = vector.extract_strided_slice %222 {offsets = [4, 1, 0], sizes = [4, 4, 2], strides = [1, 1, 1]} : vector<8x8x2xf32> to vector<4x4x2xf32>
      %c16_i32_61 = arith.constant 16 : i32
      %360 = arith.muli %arg0, %c16_i32_61 : i32
      %361 = arith.addi %360, %arg6 : i32
      %362 = arith.index_cast %361 : i32 to index
      %c75 = arith.constant 75 : index
      %363 = memref.load %arg3[%362, %c75] : memref<32x81xf32, #tpu.memory_space<smem>>
      %364 = vector.broadcast %363 : f32 to vector<4x4x2xf32>
      %365 = arith.mulf %359, %364 : vector<4x4x2xf32>
      %366 = arith.addf %358, %365 : vector<4x4x2xf32>
      %367 = vector.extract_strided_slice %222 {offsets = [4, 2, 0], sizes = [4, 4, 2], strides = [1, 1, 1]} : vector<8x8x2xf32> to vector<4x4x2xf32>
      %c16_i32_62 = arith.constant 16 : i32
      %368 = arith.muli %arg0, %c16_i32_62 : i32
      %369 = arith.addi %368, %arg6 : i32
      %370 = arith.index_cast %369 : i32 to index
      %c77 = arith.constant 77 : index
      %371 = memref.load %arg3[%370, %c77] : memref<32x81xf32, #tpu.memory_space<smem>>
      %372 = vector.broadcast %371 : f32 to vector<4x4x2xf32>
      %373 = arith.mulf %367, %372 : vector<4x4x2xf32>
      %374 = arith.addf %366, %373 : vector<4x4x2xf32>
      %375 = vector.extract_strided_slice %222 {offsets = [4, 3, 0], sizes = [4, 4, 2], strides = [1, 1, 1]} : vector<8x8x2xf32> to vector<4x4x2xf32>
      %c16_i32_63 = arith.constant 16 : i32
      %376 = arith.muli %arg0, %c16_i32_63 : i32
      %377 = arith.addi %376, %arg6 : i32
      %378 = arith.index_cast %377 : i32 to index
      %c79 = arith.constant 79 : index
      %379 = memref.load %arg3[%378, %c79] : memref<32x81xf32, #tpu.memory_space<smem>>
      %380 = vector.broadcast %379 : f32 to vector<4x4x2xf32>
      %381 = arith.mulf %375, %380 : vector<4x4x2xf32>
      %382 = arith.addf %374, %381 : vector<4x4x2xf32>
      %c4_i32_64 = arith.constant 4 : i32
      %383 = arith.muli %arg6, %c4_i32_64 : i32
      %c2_i32 = arith.constant 2 : i32
      %384 = arith.addi %383, %c2_i32 : i32
      %c0_i32_65 = arith.constant 0 : i32
      %385 = arith.addi %384, %c0_i32_65 : i32
      %c0_66 = arith.constant 0 : index
      %386 = arith.index_cast %385 : i32 to index
      %c0_67 = arith.constant 0 : index
      %c0_68 = arith.constant 0 : index
      %c0_69 = arith.constant 0 : index
      %387 = vector.load %arg2[%c0_66, %386, %c0_67, %c0_68, %c0_69] : memref<1x64x8x8x2xf32, #tpu.memory_space<vmem>>, vector<1x1x8x8x2xf32>
      %388 = vector.shape_cast %387 : vector<1x1x8x8x2xf32> to vector<8x8x2xf32>
      %389 = vector.extract_strided_slice %388 {offsets = [0, 0, 0], sizes = [4, 4, 2], strides = [1, 1, 1]} : vector<8x8x2xf32> to vector<4x4x2xf32>
      %c16_i32_70 = arith.constant 16 : i32
      %390 = arith.muli %arg0, %c16_i32_70 : i32
      %391 = arith.addi %390, %arg6 : i32
      %392 = arith.index_cast %391 : i32 to index
      %c9 = arith.constant 9 : index
      %393 = memref.load %arg3[%392, %c9] : memref<32x81xf32, #tpu.memory_space<smem>>
      %394 = vector.broadcast %393 : f32 to vector<4x4x2xf32>
      %395 = arith.mulf %389, %394 : vector<4x4x2xf32>
      %396 = arith.addf %382, %395 : vector<4x4x2xf32>
      %397 = vector.extract_strided_slice %388 {offsets = [0, 1, 0], sizes = [4, 4, 2], strides = [1, 1, 1]} : vector<8x8x2xf32> to vector<4x4x2xf32>
      %c16_i32_71 = arith.constant 16 : i32
      %398 = arith.muli %arg0, %c16_i32_71 : i32
      %399 = arith.addi %398, %arg6 : i32
      %400 = arith.index_cast %399 : i32 to index
      %c11 = arith.constant 11 : index
      %401 = memref.load %arg3[%400, %c11] : memref<32x81xf32, #tpu.memory_space<smem>>
      %402 = vector.broadcast %401 : f32 to vector<4x4x2xf32>
      %403 = arith.mulf %397, %402 : vector<4x4x2xf32>
      %404 = arith.addf %396, %403 : vector<4x4x2xf32>
      %405 = vector.extract_strided_slice %388 {offsets = [0, 2, 0], sizes = [4, 4, 2], strides = [1, 1, 1]} : vector<8x8x2xf32> to vector<4x4x2xf32>
      %c16_i32_72 = arith.constant 16 : i32
      %406 = arith.muli %arg0, %c16_i32_72 : i32
      %407 = arith.addi %406, %arg6 : i32
      %408 = arith.index_cast %407 : i32 to index
      %c13 = arith.constant 13 : index
      %409 = memref.load %arg3[%408, %c13] : memref<32x81xf32, #tpu.memory_space<smem>>
      %410 = vector.broadcast %409 : f32 to vector<4x4x2xf32>
      %411 = arith.mulf %405, %410 : vector<4x4x2xf32>
      %412 = arith.addf %404, %411 : vector<4x4x2xf32>
      %413 = vector.extract_strided_slice %388 {offsets = [0, 3, 0], sizes = [4, 4, 2], strides = [1, 1, 1]} : vector<8x8x2xf32> to vector<4x4x2xf32>
      %c16_i32_73 = arith.constant 16 : i32
      %414 = arith.muli %arg0, %c16_i32_73 : i32
      %415 = arith.addi %414, %arg6 : i32
      %416 = arith.index_cast %415 : i32 to index
      %c15 = arith.constant 15 : index
      %417 = memref.load %arg3[%416, %c15] : memref<32x81xf32, #tpu.memory_space<smem>>
      %418 = vector.broadcast %417 : f32 to vector<4x4x2xf32>
      %419 = arith.mulf %413, %418 : vector<4x4x2xf32>
      %420 = arith.addf %412, %419 : vector<4x4x2xf32>
      %421 = vector.extract_strided_slice %388 {offsets = [0, 4, 0], sizes = [4, 4, 2], strides = [1, 1, 1]} : vector<8x8x2xf32> to vector<4x4x2xf32>
      %c16_i32_74 = arith.constant 16 : i32
      %422 = arith.muli %arg0, %c16_i32_74 : i32
      %423 = arith.addi %422, %arg6 : i32
      %424 = arith.index_cast %423 : i32 to index
      %c17 = arith.constant 17 : index
      %425 = memref.load %arg3[%424, %c17] : memref<32x81xf32, #tpu.memory_space<smem>>
      %426 = vector.broadcast %425 : f32 to vector<4x4x2xf32>
      %427 = arith.mulf %421, %426 : vector<4x4x2xf32>
      %428 = arith.addf %420, %427 : vector<4x4x2xf32>
      %429 = vector.extract_strided_slice %388 {offsets = [1, 0, 0], sizes = [4, 4, 2], strides = [1, 1, 1]} : vector<8x8x2xf32> to vector<4x4x2xf32>
      %c16_i32_75 = arith.constant 16 : i32
      %430 = arith.muli %arg0, %c16_i32_75 : i32
      %431 = arith.addi %430, %arg6 : i32
      %432 = arith.index_cast %431 : i32 to index
      %c27 = arith.constant 27 : index
      %433 = memref.load %arg3[%432, %c27] : memref<32x81xf32, #tpu.memory_space<smem>>
      %434 = vector.broadcast %433 : f32 to vector<4x4x2xf32>
      %435 = arith.mulf %429, %434 : vector<4x4x2xf32>
      %436 = arith.addf %428, %435 : vector<4x4x2xf32>
      %437 = vector.extract_strided_slice %388 {offsets = [1, 1, 0], sizes = [4, 4, 2], strides = [1, 1, 1]} : vector<8x8x2xf32> to vector<4x4x2xf32>
      %c16_i32_76 = arith.constant 16 : i32
      %438 = arith.muli %arg0, %c16_i32_76 : i32
      %439 = arith.addi %438, %arg6 : i32
      %440 = arith.index_cast %439 : i32 to index
      %c29 = arith.constant 29 : index
      %441 = memref.load %arg3[%440, %c29] : memref<32x81xf32, #tpu.memory_space<smem>>
      %442 = vector.broadcast %441 : f32 to vector<4x4x2xf32>
      %443 = arith.mulf %437, %442 : vector<4x4x2xf32>
      %444 = arith.addf %436, %443 : vector<4x4x2xf32>
      %445 = vector.extract_strided_slice %388 {offsets = [1, 2, 0], sizes = [4, 4, 2], strides = [1, 1, 1]} : vector<8x8x2xf32> to vector<4x4x2xf32>
      %c16_i32_77 = arith.constant 16 : i32
      %446 = arith.muli %arg0, %c16_i32_77 : i32
      %447 = arith.addi %446, %arg6 : i32
      %448 = arith.index_cast %447 : i32 to index
      %c31 = arith.constant 31 : index
      %449 = memref.load %arg3[%448, %c31] : memref<32x81xf32, #tpu.memory_space<smem>>
      %450 = vector.broadcast %449 : f32 to vector<4x4x2xf32>
      %451 = arith.mulf %445, %450 : vector<4x4x2xf32>
      %452 = arith.addf %444, %451 : vector<4x4x2xf32>
      %453 = vector.extract_strided_slice %388 {offsets = [1, 3, 0], sizes = [4, 4, 2], strides = [1, 1, 1]} : vector<8x8x2xf32> to vector<4x4x2xf32>
      %c16_i32_78 = arith.constant 16 : i32
      %454 = arith.muli %arg0, %c16_i32_78 : i32
      %455 = arith.addi %454, %arg6 : i32
      %456 = arith.index_cast %455 : i32 to index
      %c33 = arith.constant 33 : index
      %457 = memref.load %arg3[%456, %c33] : memref<32x81xf32, #tpu.memory_space<smem>>
      %458 = vector.broadcast %457 : f32 to vector<4x4x2xf32>
      %459 = arith.mulf %453, %458 : vector<4x4x2xf32>
      %460 = arith.addf %452, %459 : vector<4x4x2xf32>
      %461 = vector.extract_strided_slice %388 {offsets = [1, 4, 0], sizes = [4, 4, 2], strides = [1, 1, 1]} : vector<8x8x2xf32> to vector<4x4x2xf32>
      %c16_i32_79 = arith.constant 16 : i32
      %462 = arith.muli %arg0, %c16_i32_79 : i32
      %463 = arith.addi %462, %arg6 : i32
      %464 = arith.index_cast %463 : i32 to index
      %c35 = arith.constant 35 : index
      %465 = memref.load %arg3[%464, %c35] : memref<32x81xf32, #tpu.memory_space<smem>>
      %466 = vector.broadcast %465 : f32 to vector<4x4x2xf32>
      %467 = arith.mulf %461, %466 : vector<4x4x2xf32>
      %468 = arith.addf %460, %467 : vector<4x4x2xf32>
      %469 = vector.extract_strided_slice %388 {offsets = [2, 0, 0], sizes = [4, 4, 2], strides = [1, 1, 1]} : vector<8x8x2xf32> to vector<4x4x2xf32>
      %c16_i32_80 = arith.constant 16 : i32
      %470 = arith.muli %arg0, %c16_i32_80 : i32
      %471 = arith.addi %470, %arg6 : i32
      %472 = arith.index_cast %471 : i32 to index
      %c45 = arith.constant 45 : index
      %473 = memref.load %arg3[%472, %c45] : memref<32x81xf32, #tpu.memory_space<smem>>
      %474 = vector.broadcast %473 : f32 to vector<4x4x2xf32>
      %475 = arith.mulf %469, %474 : vector<4x4x2xf32>
      %476 = arith.addf %468, %475 : vector<4x4x2xf32>
      %477 = vector.extract_strided_slice %388 {offsets = [2, 1, 0], sizes = [4, 4, 2], strides = [1, 1, 1]} : vector<8x8x2xf32> to vector<4x4x2xf32>
      %c16_i32_81 = arith.constant 16 : i32
      %478 = arith.muli %arg0, %c16_i32_81 : i32
      %479 = arith.addi %478, %arg6 : i32
      %480 = arith.index_cast %479 : i32 to index
      %c47 = arith.constant 47 : index
      %481 = memref.load %arg3[%480, %c47] : memref<32x81xf32, #tpu.memory_space<smem>>
      %482 = vector.broadcast %481 : f32 to vector<4x4x2xf32>
      %483 = arith.mulf %477, %482 : vector<4x4x2xf32>
      %484 = arith.addf %476, %483 : vector<4x4x2xf32>
      %485 = vector.extract_strided_slice %388 {offsets = [2, 2, 0], sizes = [4, 4, 2], strides = [1, 1, 1]} : vector<8x8x2xf32> to vector<4x4x2xf32>
      %c16_i32_82 = arith.constant 16 : i32
      %486 = arith.muli %arg0, %c16_i32_82 : i32
      %487 = arith.addi %486, %arg6 : i32
      %488 = arith.index_cast %487 : i32 to index
      %c49 = arith.constant 49 : index
      %489 = memref.load %arg3[%488, %c49] : memref<32x81xf32, #tpu.memory_space<smem>>
      %490 = vector.broadcast %489 : f32 to vector<4x4x2xf32>
      %491 = arith.mulf %485, %490 : vector<4x4x2xf32>
      %492 = arith.addf %484, %491 : vector<4x4x2xf32>
      %493 = vector.extract_strided_slice %388 {offsets = [2, 3, 0], sizes = [4, 4, 2], strides = [1, 1, 1]} : vector<8x8x2xf32> to vector<4x4x2xf32>
      %c16_i32_83 = arith.constant 16 : i32
      %494 = arith.muli %arg0, %c16_i32_83 : i32
      %495 = arith.addi %494, %arg6 : i32
      %496 = arith.index_cast %495 : i32 to index
      %c51 = arith.constant 51 : index
      %497 = memref.load %arg3[%496, %c51] : memref<32x81xf32, #tpu.memory_space<smem>>
      %498 = vector.broadcast %497 : f32 to vector<4x4x2xf32>
      %499 = arith.mulf %493, %498 : vector<4x4x2xf32>
      %500 = arith.addf %492, %499 : vector<4x4x2xf32>
      %501 = vector.extract_strided_slice %388 {offsets = [2, 4, 0], sizes = [4, 4, 2], strides = [1, 1, 1]} : vector<8x8x2xf32> to vector<4x4x2xf32>
      %c16_i32_84 = arith.constant 16 : i32
      %502 = arith.muli %arg0, %c16_i32_84 : i32
      %503 = arith.addi %502, %arg6 : i32
      %504 = arith.index_cast %503 : i32 to index
      %c53 = arith.constant 53 : index
      %505 = memref.load %arg3[%504, %c53] : memref<32x81xf32, #tpu.memory_space<smem>>
      %506 = vector.broadcast %505 : f32 to vector<4x4x2xf32>
      %507 = arith.mulf %501, %506 : vector<4x4x2xf32>
      %508 = arith.addf %500, %507 : vector<4x4x2xf32>
      %509 = vector.extract_strided_slice %388 {offsets = [3, 0, 0], sizes = [4, 4, 2], strides = [1, 1, 1]} : vector<8x8x2xf32> to vector<4x4x2xf32>
      %c16_i32_85 = arith.constant 16 : i32
      %510 = arith.muli %arg0, %c16_i32_85 : i32
      %511 = arith.addi %510, %arg6 : i32
      %512 = arith.index_cast %511 : i32 to index
      %c63 = arith.constant 63 : index
      %513 = memref.load %arg3[%512, %c63] : memref<32x81xf32, #tpu.memory_space<smem>>
      %514 = vector.broadcast %513 : f32 to vector<4x4x2xf32>
      %515 = arith.mulf %509, %514 : vector<4x4x2xf32>
      %516 = arith.addf %508, %515 : vector<4x4x2xf32>
      %517 = vector.extract_strided_slice %388 {offsets = [3, 1, 0], sizes = [4, 4, 2], strides = [1, 1, 1]} : vector<8x8x2xf32> to vector<4x4x2xf32>
      %c16_i32_86 = arith.constant 16 : i32
      %518 = arith.muli %arg0, %c16_i32_86 : i32
      %519 = arith.addi %518, %arg6 : i32
      %520 = arith.index_cast %519 : i32 to index
      %c65 = arith.constant 65 : index
      %521 = memref.load %arg3[%520, %c65] : memref<32x81xf32, #tpu.memory_space<smem>>
      %522 = vector.broadcast %521 : f32 to vector<4x4x2xf32>
      %523 = arith.mulf %517, %522 : vector<4x4x2xf32>
      %524 = arith.addf %516, %523 : vector<4x4x2xf32>
      %525 = vector.extract_strided_slice %388 {offsets = [3, 2, 0], sizes = [4, 4, 2], strides = [1, 1, 1]} : vector<8x8x2xf32> to vector<4x4x2xf32>
      %c16_i32_87 = arith.constant 16 : i32
      %526 = arith.muli %arg0, %c16_i32_87 : i32
      %527 = arith.addi %526, %arg6 : i32
      %528 = arith.index_cast %527 : i32 to index
      %c67 = arith.constant 67 : index
      %529 = memref.load %arg3[%528, %c67] : memref<32x81xf32, #tpu.memory_space<smem>>
      %530 = vector.broadcast %529 : f32 to vector<4x4x2xf32>
      %531 = arith.mulf %525, %530 : vector<4x4x2xf32>
      %532 = arith.addf %524, %531 : vector<4x4x2xf32>
      %533 = vector.extract_strided_slice %388 {offsets = [3, 3, 0], sizes = [4, 4, 2], strides = [1, 1, 1]} : vector<8x8x2xf32> to vector<4x4x2xf32>
      %c16_i32_88 = arith.constant 16 : i32
      %534 = arith.muli %arg0, %c16_i32_88 : i32
      %535 = arith.addi %534, %arg6 : i32
      %536 = arith.index_cast %535 : i32 to index
      %c69 = arith.constant 69 : index
      %537 = memref.load %arg3[%536, %c69] : memref<32x81xf32, #tpu.memory_space<smem>>
      %538 = vector.broadcast %537 : f32 to vector<4x4x2xf32>
      %539 = arith.mulf %533, %538 : vector<4x4x2xf32>
      %540 = arith.addf %532, %539 : vector<4x4x2xf32>
      %541 = vector.extract_strided_slice %388 {offsets = [3, 4, 0], sizes = [4, 4, 2], strides = [1, 1, 1]} : vector<8x8x2xf32> to vector<4x4x2xf32>
      %c16_i32_89 = arith.constant 16 : i32
      %542 = arith.muli %arg0, %c16_i32_89 : i32
      %543 = arith.addi %542, %arg6 : i32
      %544 = arith.index_cast %543 : i32 to index
      %c71 = arith.constant 71 : index
      %545 = memref.load %arg3[%544, %c71] : memref<32x81xf32, #tpu.memory_space<smem>>
      %546 = vector.broadcast %545 : f32 to vector<4x4x2xf32>
      %547 = arith.mulf %541, %546 : vector<4x4x2xf32>
      %548 = arith.addf %540, %547 : vector<4x4x2xf32>
      %c4_i32_90 = arith.constant 4 : i32
      %549 = arith.muli %arg6, %c4_i32_90 : i32
      %c2_i32_91 = arith.constant 2 : i32
      %550 = arith.addi %549, %c2_i32_91 : i32
      %c1_i32_92 = arith.constant 1 : i32
      %551 = arith.addi %550, %c1_i32_92 : i32
      %c0_93 = arith.constant 0 : index
      %552 = arith.index_cast %551 : i32 to index
      %c0_94 = arith.constant 0 : index
      %c0_95 = arith.constant 0 : index
      %c0_96 = arith.constant 0 : index
      %553 = vector.load %arg2[%c0_93, %552, %c0_94, %c0_95, %c0_96] : memref<1x64x8x8x2xf32, #tpu.memory_space<vmem>>, vector<1x1x8x8x2xf32>
      %554 = vector.shape_cast %553 : vector<1x1x8x8x2xf32> to vector<8x8x2xf32>
      %555 = vector.extract_strided_slice %554 {offsets = [0, 0, 0], sizes = [4, 4, 2], strides = [1, 1, 1]} : vector<8x8x2xf32> to vector<4x4x2xf32>
      %c16_i32_97 = arith.constant 16 : i32
      %556 = arith.muli %arg0, %c16_i32_97 : i32
      %557 = arith.addi %556, %arg6 : i32
      %558 = arith.index_cast %557 : i32 to index
      %c10 = arith.constant 10 : index
      %559 = memref.load %arg3[%558, %c10] : memref<32x81xf32, #tpu.memory_space<smem>>
      %560 = vector.broadcast %559 : f32 to vector<4x4x2xf32>
      %561 = arith.mulf %555, %560 : vector<4x4x2xf32>
      %562 = arith.addf %548, %561 : vector<4x4x2xf32>
      %563 = vector.extract_strided_slice %554 {offsets = [0, 1, 0], sizes = [4, 4, 2], strides = [1, 1, 1]} : vector<8x8x2xf32> to vector<4x4x2xf32>
      %c16_i32_98 = arith.constant 16 : i32
      %564 = arith.muli %arg0, %c16_i32_98 : i32
      %565 = arith.addi %564, %arg6 : i32
      %566 = arith.index_cast %565 : i32 to index
      %c12 = arith.constant 12 : index
      %567 = memref.load %arg3[%566, %c12] : memref<32x81xf32, #tpu.memory_space<smem>>
      %568 = vector.broadcast %567 : f32 to vector<4x4x2xf32>
      %569 = arith.mulf %563, %568 : vector<4x4x2xf32>
      %570 = arith.addf %562, %569 : vector<4x4x2xf32>
      %571 = vector.extract_strided_slice %554 {offsets = [0, 2, 0], sizes = [4, 4, 2], strides = [1, 1, 1]} : vector<8x8x2xf32> to vector<4x4x2xf32>
      %c16_i32_99 = arith.constant 16 : i32
      %572 = arith.muli %arg0, %c16_i32_99 : i32
      %573 = arith.addi %572, %arg6 : i32
      %574 = arith.index_cast %573 : i32 to index
      %c14 = arith.constant 14 : index
      %575 = memref.load %arg3[%574, %c14] : memref<32x81xf32, #tpu.memory_space<smem>>
      %576 = vector.broadcast %575 : f32 to vector<4x4x2xf32>
      %577 = arith.mulf %571, %576 : vector<4x4x2xf32>
      %578 = arith.addf %570, %577 : vector<4x4x2xf32>
      %579 = vector.extract_strided_slice %554 {offsets = [0, 3, 0], sizes = [4, 4, 2], strides = [1, 1, 1]} : vector<8x8x2xf32> to vector<4x4x2xf32>
      %c16_i32_100 = arith.constant 16 : i32
      %580 = arith.muli %arg0, %c16_i32_100 : i32
      %581 = arith.addi %580, %arg6 : i32
      %582 = arith.index_cast %581 : i32 to index
      %c16 = arith.constant 16 : index
      %583 = memref.load %arg3[%582, %c16] : memref<32x81xf32, #tpu.memory_space<smem>>
      %584 = vector.broadcast %583 : f32 to vector<4x4x2xf32>
      %585 = arith.mulf %579, %584 : vector<4x4x2xf32>
      %586 = arith.addf %578, %585 : vector<4x4x2xf32>
      %587 = vector.extract_strided_slice %554 {offsets = [1, 0, 0], sizes = [4, 4, 2], strides = [1, 1, 1]} : vector<8x8x2xf32> to vector<4x4x2xf32>
      %c16_i32_101 = arith.constant 16 : i32
      %588 = arith.muli %arg0, %c16_i32_101 : i32
      %589 = arith.addi %588, %arg6 : i32
      %590 = arith.index_cast %589 : i32 to index
      %c28 = arith.constant 28 : index
      %591 = memref.load %arg3[%590, %c28] : memref<32x81xf32, #tpu.memory_space<smem>>
      %592 = vector.broadcast %591 : f32 to vector<4x4x2xf32>
      %593 = arith.mulf %587, %592 : vector<4x4x2xf32>
      %594 = arith.addf %586, %593 : vector<4x4x2xf32>
      %595 = vector.extract_strided_slice %554 {offsets = [1, 1, 0], sizes = [4, 4, 2], strides = [1, 1, 1]} : vector<8x8x2xf32> to vector<4x4x2xf32>
      %c16_i32_102 = arith.constant 16 : i32
      %596 = arith.muli %arg0, %c16_i32_102 : i32
      %597 = arith.addi %596, %arg6 : i32
      %598 = arith.index_cast %597 : i32 to index
      %c30 = arith.constant 30 : index
      %599 = memref.load %arg3[%598, %c30] : memref<32x81xf32, #tpu.memory_space<smem>>
      %600 = vector.broadcast %599 : f32 to vector<4x4x2xf32>
      %601 = arith.mulf %595, %600 : vector<4x4x2xf32>
      %602 = arith.addf %594, %601 : vector<4x4x2xf32>
      %603 = vector.extract_strided_slice %554 {offsets = [1, 2, 0], sizes = [4, 4, 2], strides = [1, 1, 1]} : vector<8x8x2xf32> to vector<4x4x2xf32>
      %c16_i32_103 = arith.constant 16 : i32
      %604 = arith.muli %arg0, %c16_i32_103 : i32
      %605 = arith.addi %604, %arg6 : i32
      %606 = arith.index_cast %605 : i32 to index
      %c32 = arith.constant 32 : index
      %607 = memref.load %arg3[%606, %c32] : memref<32x81xf32, #tpu.memory_space<smem>>
      %608 = vector.broadcast %607 : f32 to vector<4x4x2xf32>
      %609 = arith.mulf %603, %608 : vector<4x4x2xf32>
      %610 = arith.addf %602, %609 : vector<4x4x2xf32>
      %611 = vector.extract_strided_slice %554 {offsets = [1, 3, 0], sizes = [4, 4, 2], strides = [1, 1, 1]} : vector<8x8x2xf32> to vector<4x4x2xf32>
      %c16_i32_104 = arith.constant 16 : i32
      %612 = arith.muli %arg0, %c16_i32_104 : i32
      %613 = arith.addi %612, %arg6 : i32
      %614 = arith.index_cast %613 : i32 to index
      %c34 = arith.constant 34 : index
      %615 = memref.load %arg3[%614, %c34] : memref<32x81xf32, #tpu.memory_space<smem>>
      %616 = vector.broadcast %615 : f32 to vector<4x4x2xf32>
      %617 = arith.mulf %611, %616 : vector<4x4x2xf32>
      %618 = arith.addf %610, %617 : vector<4x4x2xf32>
      %619 = vector.extract_strided_slice %554 {offsets = [2, 0, 0], sizes = [4, 4, 2], strides = [1, 1, 1]} : vector<8x8x2xf32> to vector<4x4x2xf32>
      %c16_i32_105 = arith.constant 16 : i32
      %620 = arith.muli %arg0, %c16_i32_105 : i32
      %621 = arith.addi %620, %arg6 : i32
      %622 = arith.index_cast %621 : i32 to index
      %c46 = arith.constant 46 : index
      %623 = memref.load %arg3[%622, %c46] : memref<32x81xf32, #tpu.memory_space<smem>>
      %624 = vector.broadcast %623 : f32 to vector<4x4x2xf32>
      %625 = arith.mulf %619, %624 : vector<4x4x2xf32>
      %626 = arith.addf %618, %625 : vector<4x4x2xf32>
      %627 = vector.extract_strided_slice %554 {offsets = [2, 1, 0], sizes = [4, 4, 2], strides = [1, 1, 1]} : vector<8x8x2xf32> to vector<4x4x2xf32>
      %c16_i32_106 = arith.constant 16 : i32
      %628 = arith.muli %arg0, %c16_i32_106 : i32
      %629 = arith.addi %628, %arg6 : i32
      %630 = arith.index_cast %629 : i32 to index
      %c48 = arith.constant 48 : index
      %631 = memref.load %arg3[%630, %c48] : memref<32x81xf32, #tpu.memory_space<smem>>
      %632 = vector.broadcast %631 : f32 to vector<4x4x2xf32>
      %633 = arith.mulf %627, %632 : vector<4x4x2xf32>
      %634 = arith.addf %626, %633 : vector<4x4x2xf32>
      %635 = vector.extract_strided_slice %554 {offsets = [2, 2, 0], sizes = [4, 4, 2], strides = [1, 1, 1]} : vector<8x8x2xf32> to vector<4x4x2xf32>
      %c16_i32_107 = arith.constant 16 : i32
      %636 = arith.muli %arg0, %c16_i32_107 : i32
      %637 = arith.addi %636, %arg6 : i32
      %638 = arith.index_cast %637 : i32 to index
      %c50 = arith.constant 50 : index
      %639 = memref.load %arg3[%638, %c50] : memref<32x81xf32, #tpu.memory_space<smem>>
      %640 = vector.broadcast %639 : f32 to vector<4x4x2xf32>
      %641 = arith.mulf %635, %640 : vector<4x4x2xf32>
      %642 = arith.addf %634, %641 : vector<4x4x2xf32>
      %643 = vector.extract_strided_slice %554 {offsets = [2, 3, 0], sizes = [4, 4, 2], strides = [1, 1, 1]} : vector<8x8x2xf32> to vector<4x4x2xf32>
      %c16_i32_108 = arith.constant 16 : i32
      %644 = arith.muli %arg0, %c16_i32_108 : i32
      %645 = arith.addi %644, %arg6 : i32
      %646 = arith.index_cast %645 : i32 to index
      %c52 = arith.constant 52 : index
      %647 = memref.load %arg3[%646, %c52] : memref<32x81xf32, #tpu.memory_space<smem>>
      %648 = vector.broadcast %647 : f32 to vector<4x4x2xf32>
      %649 = arith.mulf %643, %648 : vector<4x4x2xf32>
      %650 = arith.addf %642, %649 : vector<4x4x2xf32>
      %651 = vector.extract_strided_slice %554 {offsets = [3, 0, 0], sizes = [4, 4, 2], strides = [1, 1, 1]} : vector<8x8x2xf32> to vector<4x4x2xf32>
      %c16_i32_109 = arith.constant 16 : i32
      %652 = arith.muli %arg0, %c16_i32_109 : i32
      %653 = arith.addi %652, %arg6 : i32
      %654 = arith.index_cast %653 : i32 to index
      %c64 = arith.constant 64 : index
      %655 = memref.load %arg3[%654, %c64] : memref<32x81xf32, #tpu.memory_space<smem>>
      %656 = vector.broadcast %655 : f32 to vector<4x4x2xf32>
      %657 = arith.mulf %651, %656 : vector<4x4x2xf32>
      %658 = arith.addf %650, %657 : vector<4x4x2xf32>
      %659 = vector.extract_strided_slice %554 {offsets = [3, 1, 0], sizes = [4, 4, 2], strides = [1, 1, 1]} : vector<8x8x2xf32> to vector<4x4x2xf32>
      %c16_i32_110 = arith.constant 16 : i32
      %660 = arith.muli %arg0, %c16_i32_110 : i32
      %661 = arith.addi %660, %arg6 : i32
      %662 = arith.index_cast %661 : i32 to index
      %c66 = arith.constant 66 : index
      %663 = memref.load %arg3[%662, %c66] : memref<32x81xf32, #tpu.memory_space<smem>>
      %664 = vector.broadcast %663 : f32 to vector<4x4x2xf32>
      %665 = arith.mulf %659, %664 : vector<4x4x2xf32>
      %666 = arith.addf %658, %665 : vector<4x4x2xf32>
      %667 = vector.extract_strided_slice %554 {offsets = [3, 2, 0], sizes = [4, 4, 2], strides = [1, 1, 1]} : vector<8x8x2xf32> to vector<4x4x2xf32>
      %c16_i32_111 = arith.constant 16 : i32
      %668 = arith.muli %arg0, %c16_i32_111 : i32
      %669 = arith.addi %668, %arg6 : i32
      %670 = arith.index_cast %669 : i32 to index
      %c68 = arith.constant 68 : index
      %671 = memref.load %arg3[%670, %c68] : memref<32x81xf32, #tpu.memory_space<smem>>
      %672 = vector.broadcast %671 : f32 to vector<4x4x2xf32>
      %673 = arith.mulf %667, %672 : vector<4x4x2xf32>
      %674 = arith.addf %666, %673 : vector<4x4x2xf32>
      %675 = vector.extract_strided_slice %554 {offsets = [3, 3, 0], sizes = [4, 4, 2], strides = [1, 1, 1]} : vector<8x8x2xf32> to vector<4x4x2xf32>
      %c16_i32_112 = arith.constant 16 : i32
      %676 = arith.muli %arg0, %c16_i32_112 : i32
      %677 = arith.addi %676, %arg6 : i32
      %678 = arith.index_cast %677 : i32 to index
      %c70 = arith.constant 70 : index
      %679 = memref.load %arg3[%678, %c70] : memref<32x81xf32, #tpu.memory_space<smem>>
      %680 = vector.broadcast %679 : f32 to vector<4x4x2xf32>
      %681 = arith.mulf %675, %680 : vector<4x4x2xf32>
      %682 = arith.addf %674, %681 : vector<4x4x2xf32>
      %683 = arith.addf %arg7, %682 : vector<4x4x2xf32>
      scf.yield %683 : vector<4x4x2xf32>
    }
    %c16_i32_0 = arith.constant 16 : i32
    %3 = arith.index_cast %arg0 : i32 to index
    %4 = memref.load %arg4[%3] : memref<2xf32, #tpu.memory_space<smem>>
    %5 = vector.broadcast %4 : f32 to vector<4x4x2xf32>
    %6 = arith.addf %2, %5 : vector<4x4x2xf32>
    %c0 = arith.constant 0 : index
    %c0_1 = arith.constant 0 : index
    %c0_2 = arith.constant 0 : index
    %c0_3 = arith.constant 0 : index
    %7 = vector.load %arg5[%c0, %c0_1, %c0_2, %c0_3] : memref<1x4x4x2xf32, #tpu.memory_space<vmem>>, vector<1x4x4x2xf32>
    %8 = vector.shape_cast %7 : vector<1x4x4x2xf32> to vector<4x4x2xf32>
    %9 = vector.shape_cast %6 : vector<4x4x2xf32> to vector<1x4x4x2xf32>
    tpu.vector_store %arg5[%c0, %c0_1, %c0_2, %c0_3], %9 {strides = array<i32>} : memref<1x4x4x2xf32, #tpu.memory_space<vmem>>, vector<1x4x4x2xf32>,
    return
  }
  func.func @transform_0(%arg0: i32, %arg1: i32) -> (i32, i32, i32, i32, i32) {
    %c0_i32 = arith.constant 0 : i32
    %c0_i32_0 = arith.constant 0 : i32
    %c0_i32_1 = arith.constant 0 : i32
    %c0_i32_2 = arith.constant 0 : i32
    return %arg0, %c0_i32, %c0_i32_0, %c0_i32_1, %arg1 : i32, i32, i32, i32, i32
  }
  func.func @transform_1(%arg0: i32, %arg1: i32) -> (i32, i32) {
    %c0_i32 = arith.constant 0 : i32
    %c0_i32_0 = arith.constant 0 : i32
    %c0_i32_1 = arith.constant 0 : i32
    return %c0_i32, %c0_i32_0 : i32, i32
  }
  func.func @transform_2(%arg0: i32, %arg1: i32) -> i32 {
    %c0_i32 = arith.constant 0 : i32
    %c0_i32_0 = arith.constant 0 : i32
    return %c0_i32 : i32
  }
  func.func @transform_3(%arg0: i32, %arg1: i32) -> (i32, i32, i32, i32) {
    %c0_i32 = arith.constant 0 : i32
    %c0_i32_0 = arith.constant 0 : i32
    %c0_i32_1 = arith.constant 0 : i32
    return %arg0, %c0_i32, %c0_i32_0, %arg1 : i32, i32, i32, i32
  }
}

</mosaic_0001>

<llo_original>
// kernel: tpu_custom_call.1
$region0: #{tpu_custom_call.1}
  #allocation0 [shape = 'u32[]', space=smem, size = 0x4, offset = 0x4, fixed_abs, tag = 'smem constant byte address 0x4 - core index']
  #allocation1 [shape = 'u32[144,128]{1,0:T(1,128)}', space=vmem, size = 0x12000, scoped, tag = 'internal scratch']
  %s0 = inlined_call_operand.vmem [shape: f32[2,64,8,8,2], index: 0, kind: input, shape index: {}]
  %s1 = inlined_call_operand.vmem [shape: f32[32,81], index: 1, kind: input, shape index: {}]
  %s2 = inlined_call_operand.vmem [shape: f32[2], index: 2, kind: input, shape index: {}]
  %s3 = inlined_call_operand.vmem [shape: f32[2,4,4,2], index: 3, kind: output, shape index: {}]
  %s4 = sld [smem:[#allocation0]]
  $region60: #{tpu_custom_call.1} parent=0
    _
  %s6 = ssub.s32 1, %s4
  %s7 = scalar_select 0, %s6, %s4
  $region1: #{tpu_custom_call.1} parent=0
    #allocation2 [shape = 'u8[16384]{0}', space=smem, size = 0x4000, scoped, tag = 'input window, operand 1, single buffered']
    #allocation3 [shape = 's32[2]{0}', space=sflag, size = 0x8, scoped, tag = 'scoped memory for tpu_custom_call.1']
    #allocation4 [shape = 'u8[512]{0}', space=smem, size = 0x200, scoped, tag = 'input window, operand 2, single buffered']
    #allocation5 [shape = 's32[1]{0}', space=sflag, size = 0x4, scoped, tag = 'scoped memory for tpu_custom_call.1']
    %8 = vsyncpa [#allocation3], 0
    %9 = vsyncpa [#allocation5], 0
    loop: start=0, step=1, limit=4
    $region2: #{tpu_custom_call.1} parent=1 // loop_pre_header
      _
    $region3: #{tpu_custom_call.1} parent=1 // loop_header
      %s11 = sphi 0, %s15
      %p12 = scmp.ge.s32.totalorder %s11, 4
      %s18 = sphi 0, %s30
      %s19 = sphi 0, %s26
      %s20 = sphi 0, %s18
      %s21 = sphi 0, %s19
      %s22 = sphi 0, %s20
      %s23 = sphi 0, %s21
      %s35 = sphi 0, %s37
      %s38 = sphi 0, %s35
      %s39 = sphi 0, %s38
      %s55 = sphi 0, %s39
      %s59 = sphi 0, %s59
      %s61 = sphi 0, %s59
      %s62 = sphi 0, %s61
      %s76 = sphi 0, %s62
      %s80 = sphi 0, %s80
      %s82 = sphi 0, %s80
      %s83 = sphi 0, %s82
      %s97 = sphi 0, %s83
      %s105 = sphi 0, %s107
      %s108 = sphi 0, %s105
      %s109 = sphi 0, %s108
      %s125 = sphi 0, %s109
    $region4: #{tpu_custom_call.1} parent=1 // loop_header_branch
      %14 = sbr.rel (%p12) target = $region8
    $region5: #{tpu_custom_call.1} parent=1 // loop_body
      %s16 = ssub.s32 %s11, 1
      %s17 = ssub.s32 %s11, 2
      %s24 = sadd.s32 1, %s19
      %p25 = scmp.ge.s32.totalorder %s24, 1
      %s26 = scalar_select %p25, 0, %s24
      %s27 = sadd.s32 1, %s18
      %s28 = scalar_select %p25, %s27, %s18
      %p29 = scmp.ge.s32.totalorder %s28, 2
      %s30 = scalar_select %p29, 0, %s28
      %s31 = ssub.s32 %s18, %s30
      %s32 = ssub.s32 %s19, %s26
      %s33 = sor.u32 %s31, %s32
      %p34 = scmp.eq.s32.totalorder %s33, 0
      %s36 = sadd.s32 %s35, 1
      %s37 = scalar_select %p34, %s35, %s36
      %p40 = pneg %p34
      %p41 = scmp.eq.s32.totalorder %s11, 1
      %p42 = por %p40, %p41
      %p43 = scmp.ne.s32.totalorder %s35, %s38
      %p44 = scmp.eq.s32.totalorder %s11, 0
      %p45 = por %p43, %p44
      %p46 = scmp.ne.s32.totalorder %s35, %s38
      %p47 = scmp.eq.s32.totalorder %s16, 1
      %p48 = por %p46, %p47
      %p49 = scmp.ne.s32.totalorder %s38, %s39
      %p50 = scmp.eq.s32.totalorder %s16, 0
      %p51 = por %p49, %p50
      %p52 = scmp.ne.s32.totalorder %s38, %s39
      %p53 = scmp.eq.s32.totalorder %s17, 1
      %p54 = por %p52, %p53
      %p56 = scmp.ne.s32.totalorder %s39, %s55
      %p57 = scmp.eq.s32.totalorder %s17, 0
      %p58 = por %p56, %p57
      %s60 = sadd.s32 %s59, 1
      %p63 = scmp.eq.s32.totalorder %s11, 1
      %p64 = scmp.ne.s32.totalorder %s59, %s61
      %p65 = scmp.eq.s32.totalorder %s11, 0
      %p66 = por %p64, %p65
      %p67 = scmp.ne.s32.totalorder %s59, %s61
      %p68 = scmp.eq.s32.totalorder %s16, 1
      %p69 = por %p67, %p68
      %p70 = scmp.ne.s32.totalorder %s61, %s62
      %p71 = scmp.eq.s32.totalorder %s16, 0
      %p72 = por %p70, %p71
      %p73 = scmp.ne.s32.totalorder %s61, %s62
      %p74 = scmp.eq.s32.totalorder %s17, 1
      %p75 = por %p73, %p74
      %p77 = scmp.ne.s32.totalorder %s62, %s76
      %p78 = scmp.eq.s32.totalorder %s17, 0
      %p79 = por %p77, %p78
      %s81 = sadd.s32 %s80, 1
      %p84 = scmp.eq.s32.totalorder %s11, 1
      %p85 = scmp.ne.s32.totalorder %s80, %s82
      %p86 = scmp.eq.s32.totalorder %s11, 0
      %p87 = por %p85, %p86
      %p88 = scmp.ne.s32.totalorder %s80, %s82
      %p89 = scmp.eq.s32.totalorder %s16, 1
      %p90 = por %p88, %p89
      %p91 = scmp.ne.s32.totalorder %s82, %s83
      %p92 = scmp.eq.s32.totalorder %s16, 0
      %p93 = por %p91, %p92
      %p94 = scmp.ne.s32.totalorder %s82, %s83
      %p95 = scmp.eq.s32.totalorder %s17, 1
      %p96 = por %p94, %p95
      %p98 = scmp.ne.s32.totalorder %s83, %s97
      %p99 = scmp.eq.s32.totalorder %s17, 0
      %p100 = por %p98, %p99
      %s101 = ssub.s32 %s18, %s30
      %s102 = ssub.s32 %s19, %s26
      %s103 = sor.u32 %s101, %s102
      %p104 = scmp.eq.s32.totalorder %s103, 0
      %s106 = sadd.s32 %s105, 1
      %s107 = scalar_select %p104, %s105, %s106
      %p110 = pneg %p104
      %p111 = scmp.eq.s32.totalorder %s11, 1
      %p112 = por %p110, %p111
      %p113 = scmp.ne.s32.totalorder %s105, %s108
      %p114 = scmp.eq.s32.totalorder %s11, 0
      %p115 = por %p113, %p114
      %p116 = scmp.ne.s32.totalorder %s105, %s108
      %p117 = scmp.eq.s32.totalorder %s16, 1
      %p118 = por %p116, %p117
      %p119 = scmp.ne.s32.totalorder %s108, %s109
      %p120 = scmp.eq.s32.totalorder %s16, 0
      %p121 = por %p119, %p120
      %p122 = scmp.ne.s32.totalorder %s108, %s109
      %p123 = scmp.eq.s32.totalorder %s17, 1
      %p124 = por %p122, %p123
      %p126 = scmp.ne.s32.totalorder %s109, %s125
      %p127 = scmp.eq.s32.totalorder %s17, 0
      %p128 = por %p126, %p127
      %p129 = scmp.le.s32.totalorder 1, %s11
      %p130 = scmp.lt.s32.totalorder %s11, 3
      %p131 = pnand %p129, %p130
      %p132 = pneg %p131
      // Predicated region
      $region9: #{tpu_custom_call.1} parent=5 // pred_check
        _
      $region10: #{tpu_custom_call.1} parent=5 // pred_check_branch
        %134 = sbr.rel (%p131) target = $region12
      $region11: #{tpu_custom_call.1} parent=5 // pred_region
        %s135 = ssub.s32 %s11, 1
        // Predicated region
        $region13: #{tpu_custom_call.1} parent=11 // pred_check
          %p136 = pneg %p72
        $region14: #{tpu_custom_call.1} parent=11 // pred_check_branch
          %138 = sbr.rel (%p136) target = $region16
        $region15: #{tpu_custom_call.1} parent=11 // pred_region
          %s140 = ssub.s32 512, 512
          %141 = vsyncadd [#allocation3], %s140
          %s142 = sshll.u32 %s1, 4
          %s143 = int_to_ptr.vmem [resolvable:$true] %s142
          %148 = dma.vmem_to_smem %s143, 512, [#allocation2], [#allocation3], 128, 128, 8
        $region16: #{tpu_custom_call.1} parent=11 // pred_fallthru
          _
        // Predicated region
        $region17: #{tpu_custom_call.1} parent=11 // pred_check
          %p149 = pneg %p93
        $region18: #{tpu_custom_call.1} parent=11 // pred_check_branch
          %151 = sbr.rel (%p149) target = $region20
        $region19: #{tpu_custom_call.1} parent=11 // pred_region
          %s153 = ssub.s32 16, 16
          %154 = vsyncadd [#allocation5], %s153
          %s156 = sshll.u32 %s2, 4
          %s157 = int_to_ptr.vmem [resolvable:$true] %s156
          %159 = dma.vmem_to_smem %s157, 16, [#allocation4], [#allocation5]
        $region20: #{tpu_custom_call.1} parent=11 // pred_fallthru
          _
      $region12: #{tpu_custom_call.1} parent=5 // pred_fallthru
        _
      %p160 = scmp.lt.s32.totalorder %s11, 2
      // Predicated region
      $region21: #{tpu_custom_call.1} parent=5 // pred_check
        %p161 = pneg %p160
      $region22: #{tpu_custom_call.1} parent=5 // pred_check_branch
        %163 = sbr.rel (%p161) target = $region24
      $region23: #{tpu_custom_call.1} parent=5 // pred_region
        // Predicated region
        $region25: #{tpu_custom_call.1} parent=23 // pred_check
          %p164 = pneg %p45
        $region26: #{tpu_custom_call.1} parent=23 // pred_check_branch
          %166 = sbr.rel (%p164) target = $region28
        $region27: #{tpu_custom_call.1} parent=23 // pred_region
          %p167 = scmp.lt.s32.totalorder %s18, 1
          %s168 = scalar_select %p167, %s18, 1
          %p169 = scmp.lt.s32.totalorder %s19, 0
          %s170 = scalar_select %p169, %s19, 0
          %s171 = smul.addr %s168, 512
          %s172 = sadd.s32 %s170, %s171
          %s173 = smul.addr %s172, 8
          %s174 = scalar_lea.vmem %s0, %s173
        $region28: #{tpu_custom_call.1} parent=23 // pred_fallthru
          _
      $region24: #{tpu_custom_call.1} parent=5 // pred_fallthru
        _
      %p175 = scmp.le.s32.totalorder 1, %s11
      %p176 = scmp.lt.s32.totalorder %s11, 3
      %p177 = pnand %p175, %p176
      %p178 = pneg %p177
      // Predicated region
      $region29: #{tpu_custom_call.1} parent=5 // pred_check
        _
      $region30: #{tpu_custom_call.1} parent=5 // pred_check_branch
        %180 = sbr.rel (%p177) target = $region32
      $region31: #{tpu_custom_call.1} parent=5 // pred_region
        %s181 = ssub.s32 %s11, 1
        // Predicated region
        $region33: #{tpu_custom_call.1} parent=31 // pred_check
          %p182 = pneg %p72
        $region34: #{tpu_custom_call.1} parent=31 // pred_check_branch
          %184 = sbr.rel (%p182) target = $region36
        $region35: #{tpu_custom_call.1} parent=31 // pred_region
          %185 = dma.done [#allocation3], 512
        $region36: #{tpu_custom_call.1} parent=31 // pred_fallthru
          _
        // Predicated region
        $region37: #{tpu_custom_call.1} parent=31 // pred_check
          %p186 = pneg %p93
        $region38: #{tpu_custom_call.1} parent=31 // pred_check_branch
          %188 = sbr.rel (%p186) target = $region40
        $region39: #{tpu_custom_call.1} parent=31 // pred_region
          %189 = dma.done [#allocation5], 16
        $region40: #{tpu_custom_call.1} parent=31 // pred_fallthru
          _
        %190 = sfence
        %p191 = scmp.lt.s32.totalorder %s20, 1
        %s192 = scalar_select %p191, %s20, 1
        %p193 = scmp.lt.s32.totalorder %s21, 0
        %s194 = scalar_select %p193, %s21, 0
        %s195 = smul.addr %s192, 512
        %s196 = sadd.s32 %s194, %s195
        %s197 = smul.addr %s196, 8
        %s198 = scalar_lea.vmem %s0, %s197
        %p199 = pneg %p51
        %p200 = pneg %p48
        %p201 = pneg %p72
        %p202 = pneg %p69
        %p203 = pneg %p93
        %p204 = pneg %p90
        %p205 = pneg %p121
        %p206 = pneg %p118
        %p207 = scmp.lt.s32.totalorder %s20, 1
        %s208 = scalar_select %p207, %s20, 1
        %p209 = scmp.lt.s32.totalorder %s21, 0
        %s210 = scalar_select %p209, %s21, 0
        %s211 = smul.addr %s208, 4
        %s212 = sadd.s32 %s210, %s211
        %s213 = smul.addr %s212, 4
        %s214 = scalar_lea.vmem %s3, %s213
        %p215 = scmp.lt.s32.totalorder %s20, 1
        %s216 = scalar_select %p215, %s20, 1
        %p217 = scmp.lt.s32.totalorder %s21, 0
        %s218 = scalar_select %p217, %s21, 0
        %s219 = smul.addr %s216, 512
        %s220 = sadd.s32 %s218, %s219
        %s221 = smul.addr %s220, 8
        %s222 = scalar_lea.vmem %s0, %s221
        %p223 = scmp.lt.s32.totalorder %s20, 1
        %s224 = scalar_select %p223, %s20, 1
        %p225 = scmp.lt.s32.totalorder %s21, 0
        %s226 = scalar_select %p225, %s21, 0
        %s227 = smul.addr %s224, 4
        %s228 = sadd.s32 %s226, %s227
        %s229 = smul.addr %s228, 4
        %s230 = scalar_lea.vmem %s3, %s229
        loop: start=0, step=1, limit=16
        $region41: #{tpu_custom_call.1} parent=31 // loop_pre_header
          _
        $region42: #{tpu_custom_call.1} parent=31 // loop_header
          %s232 = sphi 0, %s236
          %p233 = scmp.ge.s32.totalorder %s232, 16
          %v237 = vphi 0.0, %v1932
          %v238 = vphi 0.0, %v1933
          %v239 = vphi 0.0, %v1934
          %v240 = vphi 0.0, %v1935
        $region43: #{tpu_custom_call.1} parent=31 // loop_header_branch
          %235 = sbr.rel (%p233) target = $region47
        $region44: #{tpu_custom_call.1} parent=31 // loop_body
          %s241 = smul.u32 %s232, 4
          %s242 = smul.u32 %s241, 64
          %s243 = scalar_lea.vmem %s222, %s242
          %v244 = vld [vmem:[%s243] sm:$0xff]
          %v245 = vld [vmem:[%s243 + $0x8] sm:$0xff]
          %v246 = vld [vmem:[%s243 + $0x10] sm:$0xff]
          %v247 = vld [vmem:[%s243 + $0x18] sm:$0xff]
          %v248 = vld [vmem:[%s243 + $0x20] sm:$0xff]
          %v249 = vld [vmem:[%s243 + $0x28] sm:$0xff]
          %v250 = vld [vmem:[%s243 + $0x30] sm:$0xff]
          %v251 = vld [vmem:[%s243 + $0x38] sm:$0xff]
          %s252 = smul.u32 %s20, 16
          %s253 = sadd.s32 %s252, %s232
          %s254 = smul.u32 %s253, 128
          %s255 = sld [smem:[#allocation2 + %s254]]
          %v256 = vstv %s255
          %v257 = vmul.f32 %v244, %v256
          %v258 = vmul.f32 %v245, %v256
          %v259 = vmul.f32 %v246, %v256
          %v260 = vmul.f32 %v247, %v256
          %v261 = vadd.f32 %v257, 0.0
          %v262 = vadd.f32 %v258, 0.0
          %v263 = vadd.f32 %v259, 0.0
          %v264 = vadd.f32 %v260, 0.0
          %s265 = sadd.s32 %s254, 2
          %s266 = sld [smem:[#allocation2 + %s265]]
          %v267 = vstv %s266
          %v268 = vmul.f32 %v244, %v267
          %v269 = vmul.f32 %v245, %v267
          %v270 = vmul.f32 %v246, %v267
          %v271 = vmul.f32 %v247, %v267
          %v276 = vrot.slane %v268, 1
          %v277 = vrot.slane %v269, 1
          %v278 = vrot.slane %v270, 1
          %v279 = vrot.slane %v271, 1
          %v284 = vadd.f32 %v261, %v276
          %v285 = vadd.f32 %v262, %v277
          %v286 = vadd.f32 %v263, %v278
          %v287 = vadd.f32 %v264, %v279
          %s288 = sadd.s32 %s254, 4
          %s289 = sld [smem:[#allocation2 + %s288]]
          %v290 = vstv %s289
          %v291 = vmul.f32 %v244, %v290
          %v292 = vmul.f32 %v245, %v290
          %v293 = vmul.f32 %v246, %v290
          %v294 = vmul.f32 %v247, %v290
          %v299 = vrot.slane %v291, 2
          %v300 = vrot.slane %v292, 2
          %v301 = vrot.slane %v293, 2
          %v302 = vrot.slane %v294, 2
          %v307 = vadd.f32 %v284, %v299
          %v308 = vadd.f32 %v285, %v300
          %v309 = vadd.f32 %v286, %v301
          %v310 = vadd.f32 %v287, %v302
          %s311 = sadd.s32 %s254, 6
          %s312 = sld [smem:[#allocation2 + %s311]]
          %v313 = vstv %s312
          %v314 = vmul.f32 %v244, %v313
          %v315 = vmul.f32 %v245, %v313
          %v316 = vmul.f32 %v246, %v313
          %v317 = vmul.f32 %v247, %v313
          %v322 = vrot.slane %v314, 3
          %v323 = vrot.slane %v315, 3
          %v324 = vrot.slane %v316, 3
          %v325 = vrot.slane %v317, 3
          %v330 = vadd.f32 %v307, %v322
          %v331 = vadd.f32 %v308, %v323
          %v332 = vadd.f32 %v309, %v324
          %v333 = vadd.f32 %v310, %v325
          %s334 = sadd.s32 %s254, 8
          %s335 = sld [smem:[#allocation2 + %s334]]
          %v336 = vstv %s335
          %v337 = vmul.f32 %v244, %v336
          %v338 = vmul.f32 %v245, %v336
          %v339 = vmul.f32 %v246, %v336
          %v340 = vmul.f32 %v247, %v336
          %v345 = vrot.slane %v337, 4
          %v346 = vrot.slane %v338, 4
          %v347 = vrot.slane %v339, 4
          %v348 = vrot.slane %v340, 4
          %v353 = vadd.f32 %v330, %v345
          %v354 = vadd.f32 %v331, %v346
          %v355 = vadd.f32 %v332, %v347
          %v356 = vadd.f32 %v333, %v348
          %s357 = sadd.s32 %s254, 18
          %s358 = sld [smem:[#allocation2 + %s357]]
          %v359 = vstv %s358
          %v360 = vmul.f32 %v245, %v359
          %v361 = vmul.f32 %v246, %v359
          %v362 = vmul.f32 %v247, %v359
          %v363 = vmul.f32 %v248, %v359
          %v364 = vadd.f32 %v353, %v360
          %v365 = vadd.f32 %v354, %v361
          %v366 = vadd.f32 %v355, %v362
          %v367 = vadd.f32 %v356, %v363
          %s368 = sadd.s32 %s254, 20
          %s369 = sld [smem:[#allocation2 + %s368]]
          %v370 = vstv %s369
          %v371 = vmul.f32 %v245, %v370
          %v372 = vmul.f32 %v246, %v370
          %v373 = vmul.f32 %v247, %v370
          %v374 = vmul.f32 %v248, %v370
          %v379 = vrot.slane %v371, 1
          %v380 = vrot.slane %v372, 1
          %v381 = vrot.slane %v373, 1
          %v382 = vrot.slane %v374, 1
          %v387 = vadd.f32 %v364, %v379
          %v388 = vadd.f32 %v365, %v380
          %v389 = vadd.f32 %v366, %v381
          %v390 = vadd.f32 %v367, %v382
          %s391 = sadd.s32 %s254, 22
          %s392 = sld [smem:[#allocation2 + %s391]]
          %v393 = vstv %s392
          %v394 = vmul.f32 %v245, %v393
          %v395 = vmul.f32 %v246, %v393
          %v396 = vmul.f32 %v247, %v393
          %v397 = vmul.f32 %v248, %v393
          %v402 = vrot.slane %v394, 2
          %v403 = vrot.slane %v395, 2
          %v404 = vrot.slane %v396, 2
          %v405 = vrot.slane %v397, 2
          %v410 = vadd.f32 %v387, %v402
          %v411 = vadd.f32 %v388, %v403
          %v412 = vadd.f32 %v389, %v404
          %v413 = vadd.f32 %v390, %v405
          %s414 = sadd.s32 %s254, 24
          %s415 = sld [smem:[#allocation2 + %s414]]
          %v416 = vstv %s415
          %v417 = vmul.f32 %v245, %v416
          %v418 = vmul.f32 %v246, %v416
          %v419 = vmul.f32 %v247, %v416
          %v420 = vmul.f32 %v248, %v416
          %v425 = vrot.slane %v417, 3
          %v426 = vrot.slane %v418, 3
          %v427 = vrot.slane %v419, 3
          %v428 = vrot.slane %v420, 3
          %v433 = vadd.f32 %v410, %v425
          %v434 = vadd.f32 %v411, %v426
          %v435 = vadd.f32 %v412, %v427
          %v436 = vadd.f32 %v413, %v428
          %s437 = sadd.s32 %s254, 26
          %s438 = sld [smem:[#allocation2 + %s437]]
          %v439 = vstv %s438
          %v440 = vmul.f32 %v245, %v439
          %v441 = vmul.f32 %v246, %v439
          %v442 = vmul.f32 %v247, %v439
          %v443 = vmul.f32 %v248, %v439
          %v448 = vrot.slane %v440, 4
          %v449 = vrot.slane %v441, 4
          %v450 = vrot.slane %v442, 4
          %v451 = vrot.slane %v443, 4
          %v456 = vadd.f32 %v433, %v448
          %v457 = vadd.f32 %v434, %v449
          %v458 = vadd.f32 %v435, %v450
          %v459 = vadd.f32 %v436, %v451
          %s460 = sadd.s32 %s254, 36
          %s461 = sld [smem:[#allocation2 + %s460]]
          %v462 = vstv %s461
          %v463 = vmul.f32 %v246, %v462
          %v464 = vmul.f32 %v247, %v462
          %v465 = vmul.f32 %v248, %v462
          %v466 = vmul.f32 %v249, %v462
          %v467 = vadd.f32 %v456, %v463
          %v468 = vadd.f32 %v457, %v464
          %v469 = vadd.f32 %v458, %v465
          %v470 = vadd.f32 %v459, %v466
          %s471 = sadd.s32 %s254, 38
          %s472 = sld [smem:[#allocation2 + %s471]]
          %v473 = vstv %s472
          %v474 = vmul.f32 %v246, %v473
          %v475 = vmul.f32 %v247, %v473
          %v476 = vmul.f32 %v248, %v473
          %v477 = vmul.f32 %v249, %v473
          %v482 = vrot.slane %v474, 1
          %v483 = vrot.slane %v475, 1
          %v484 = vrot.slane %v476, 1
          %v485 = vrot.slane %v477, 1
          %v490 = vadd.f32 %v467, %v482
          %v491 = vadd.f32 %v468, %v483
          %v492 = vadd.f32 %v469, %v484
          %v493 = vadd.f32 %v470, %v485
          %s494 = sadd.s32 %s254, 40
          %s495 = sld [smem:[#allocation2 + %s494]]
          %v496 = vstv %s495
          %v497 = vmul.f32 %v246, %v496
          %v498 = vmul.f32 %v247, %v496
          %v499 = vmul.f32 %v248, %v496
          %v500 = vmul.f32 %v249, %v496
          %v505 = vrot.slane %v497, 2
          %v506 = vrot.slane %v498, 2
          %v507 = vrot.slane %v499, 2
          %v508 = vrot.slane %v500, 2
          %v513 = vadd.f32 %v490, %v505
          %v514 = vadd.f32 %v491, %v506
          %v515 = vadd.f32 %v492, %v507
          %v516 = vadd.f32 %v493, %v508
          %s517 = sadd.s32 %s254, 42
          %s518 = sld [smem:[#allocation2 + %s517]]
          %v519 = vstv %s518
          %v520 = vmul.f32 %v246, %v519
          %v521 = vmul.f32 %v247, %v519
          %v522 = vmul.f32 %v248, %v519
          %v523 = vmul.f32 %v249, %v519
          %v528 = vrot.slane %v520, 3
          %v529 = vrot.slane %v521, 3
          %v530 = vrot.slane %v522, 3
          %v531 = vrot.slane %v523, 3
          %v536 = vadd.f32 %v513, %v528
          %v537 = vadd.f32 %v514, %v529
          %v538 = vadd.f32 %v515, %v530
          %v539 = vadd.f32 %v516, %v531
          %s540 = sadd.s32 %s254, 44
          %s541 = sld [smem:[#allocation2 + %s540]]
          %v542 = vstv %s541
          %v543 = vmul.f32 %v246, %v542
          %v544 = vmul.f32 %v247, %v542
          %v545 = vmul.f32 %v248, %v542
          %v546 = vmul.f32 %v249, %v542
          %v551 = vrot.slane %v543, 4
          %v552 = vrot.slane %v544, 4
          %v553 = vrot.slane %v545, 4
          %v554 = vrot.slane %v546, 4
          %v559 = vadd.f32 %v536, %v551
          %v560 = vadd.f32 %v537, %v552
          %v561 = vadd.f32 %v538, %v553
          %v562 = vadd.f32 %v539, %v554
          %s563 = sadd.s32 %s254, 54
          %s564 = sld [smem:[#allocation2 + %s563]]
          %v565 = vstv %s564
          %v566 = vmul.f32 %v247, %v565
          %v567 = vmul.f32 %v248, %v565
          %v568 = vmul.f32 %v249, %v565
          %v569 = vmul.f32 %v250, %v565
          %v570 = vadd.f32 %v559, %v566
          %v571 = vadd.f32 %v560, %v567
          %v572 = vadd.f32 %v561, %v568
          %v573 = vadd.f32 %v562, %v569
          %s574 = sadd.s32 %s254, 56
          %s575 = sld [smem:[#allocation2 + %s574]]
          %v576 = vstv %s575
          %v577 = vmul.f32 %v247, %v576
          %v578 = vmul.f32 %v248, %v576
          %v579 = vmul.f32 %v249, %v576
          %v580 = vmul.f32 %v250, %v576
          %v585 = vrot.slane %v577, 1
          %v586 = vrot.slane %v578, 1
          %v587 = vrot.slane %v579, 1
          %v588 = vrot.slane %v580, 1
          %v593 = vadd.f32 %v570, %v585
          %v594 = vadd.f32 %v571, %v586
          %v595 = vadd.f32 %v572, %v587
          %v596 = vadd.f32 %v573, %v588
          %s597 = sadd.s32 %s254, 58
          %s598 = sld [smem:[#allocation2 + %s597]]
          %v599 = vstv %s598
          %v600 = vmul.f32 %v247, %v599
          %v601 = vmul.f32 %v248, %v599
          %v602 = vmul.f32 %v249, %v599
          %v603 = vmul.f32 %v250, %v599
          %v608 = vrot.slane %v600, 2
          %v609 = vrot.slane %v601, 2
          %v610 = vrot.slane %v602, 2
          %v611 = vrot.slane %v603, 2
          %v616 = vadd.f32 %v593, %v608
          %v617 = vadd.f32 %v594, %v609
          %v618 = vadd.f32 %v595, %v610
          %v619 = vadd.f32 %v596, %v611
          %s620 = sadd.s32 %s254, 60
          %s621 = sld [smem:[#allocation2 + %s620]]
          %v622 = vstv %s621
          %v623 = vmul.f32 %v247, %v622
          %v624 = vmul.f32 %v248, %v622
          %v625 = vmul.f32 %v249, %v622
          %v626 = vmul.f32 %v250, %v622
          %v631 = vrot.slane %v623, 3
          %v632 = vrot.slane %v624, 3
          %v633 = vrot.slane %v625, 3
          %v634 = vrot.slane %v626, 3
          %v639 = vadd.f32 %v616, %v631
          %v640 = vadd.f32 %v617, %v632
          %v641 = vadd.f32 %v618, %v633
          %v642 = vadd.f32 %v619, %v634
          %s643 = sadd.s32 %s254, 62
          %s644 = sld [smem:[#allocation2 + %s643]]
          %v645 = vstv %s644
          %v646 = vmul.f32 %v247, %v645
          %v647 = vmul.f32 %v248, %v645
          %v648 = vmul.f32 %v249, %v645
          %v649 = vmul.f32 %v250, %v645
          %v654 = vrot.slane %v646, 4
          %v655 = vrot.slane %v647, 4
          %v656 = vrot.slane %v648, 4
          %v657 = vrot.slane %v649, 4
          %v662 = vadd.f32 %v639, %v654
          %v663 = vadd.f32 %v640, %v655
          %v664 = vadd.f32 %v641, %v656
          %v665 = vadd.f32 %v642, %v657
          %s666 = sadd.s32 %s254, 72
          %s667 = sld [smem:[#allocation2 + %s666]]
          %v668 = vstv %s667
          %v669 = vmul.f32 %v248, %v668
          %v670 = vmul.f32 %v249, %v668
          %v671 = vmul.f32 %v250, %v668
          %v672 = vmul.f32 %v251, %v668
          %v673 = vadd.f32 %v662, %v669
          %v674 = vadd.f32 %v663, %v670
          %v675 = vadd.f32 %v664, %v671
          %v676 = vadd.f32 %v665, %v672
          %s677 = sadd.s32 %s254, 74
          %s678 = sld [smem:[#allocation2 + %s677]]
          %v679 = vstv %s678
          %v680 = vmul.f32 %v248, %v679
          %v681 = vmul.f32 %v249, %v679
          %v682 = vmul.f32 %v250, %v679
          %v683 = vmul.f32 %v251, %v679
          %v688 = vrot.slane %v680, 1
          %v689 = vrot.slane %v681, 1
          %v690 = vrot.slane %v682, 1
          %v691 = vrot.slane %v683, 1
          %v696 = vadd.f32 %v673, %v688
          %v697 = vadd.f32 %v674, %v689
          %v698 = vadd.f32 %v675, %v690
          %v699 = vadd.f32 %v676, %v691
          %s700 = sadd.s32 %s254, 76
          %s701 = sld [smem:[#allocation2 + %s700]]
          %v702 = vstv %s701
          %v703 = vmul.f32 %v248, %v702
          %v704 = vmul.f32 %v249, %v702
          %v705 = vmul.f32 %v250, %v702
          %v706 = vmul.f32 %v251, %v702
          %v711 = vrot.slane %v703, 2
          %v712 = vrot.slane %v704, 2
          %v713 = vrot.slane %v705, 2
          %v714 = vrot.slane %v706, 2
          %v719 = vadd.f32 %v696, %v711
          %v720 = vadd.f32 %v697, %v712
          %v721 = vadd.f32 %v698, %v713
          %v722 = vadd.f32 %v699, %v714
          %s723 = sadd.s32 %s254, 78
          %s724 = sld [smem:[#allocation2 + %s723]]
          %v725 = vstv %s724
          %v726 = vmul.f32 %v248, %v725
          %v727 = vmul.f32 %v249, %v725
          %v728 = vmul.f32 %v250, %v725
          %v729 = vmul.f32 %v251, %v725
          %v734 = vrot.slane %v726, 3
          %v735 = vrot.slane %v727, 3
          %v736 = vrot.slane %v728, 3
          %v737 = vrot.slane %v729, 3
          %v742 = vadd.f32 %v719, %v734
          %v743 = vadd.f32 %v720, %v735
          %v744 = vadd.f32 %v721, %v736
          %v745 = vadd.f32 %v722, %v737
          %s746 = sadd.s32 %s254, 80
          %s747 = sld [smem:[#allocation2 + %s746]]
          %v748 = vstv %s747
          %v749 = vmul.f32 %v248, %v748
          %v750 = vmul.f32 %v249, %v748
          %v751 = vmul.f32 %v250, %v748
          %v752 = vmul.f32 %v251, %v748
          %v757 = vrot.slane %v749, 4
          %v758 = vrot.slane %v750, 4
          %v759 = vrot.slane %v751, 4
          %v760 = vrot.slane %v752, 4
          %v765 = vadd.f32 %v742, %v757
          %v766 = vadd.f32 %v743, %v758
          %v767 = vadd.f32 %v744, %v759
          %v768 = vadd.f32 %v745, %v760
          %s769 = sadd.s32 %s241, 1
          %s770 = smul.u32 %s769, 64
          %s771 = scalar_lea.vmem %s222, %s770
          %v772 = vld [vmem:[%s771] sm:$0xff]
          %v773 = vld [vmem:[%s771 + $0x8] sm:$0xff]
          %v774 = vld [vmem:[%s771 + $0x10] sm:$0xff]
          %v775 = vld [vmem:[%s771 + $0x18] sm:$0xff]
          %v776 = vld [vmem:[%s771 + $0x20] sm:$0xff]
          %v777 = vld [vmem:[%s771 + $0x28] sm:$0xff]
          %v778 = vld [vmem:[%s771 + $0x30] sm:$0xff]
          %v779 = vld [vmem:[%s771 + $0x38] sm:$0xff]
          %s780 = sadd.s32 %s254, 1
          %s781 = sld [smem:[#allocation2 + %s780]]
          %v782 = vstv %s781
          %v783 = vmul.f32 %v772, %v782
          %v784 = vmul.f32 %v773, %v782
          %v785 = vmul.f32 %v774, %v782
          %v786 = vmul.f32 %v775, %v782
          %v787 = vadd.f32 %v765, %v783
          %v788 = vadd.f32 %v766, %v784
          %v789 = vadd.f32 %v767, %v785
          %v790 = vadd.f32 %v768, %v786
          %s791 = sadd.s32 %s254, 3
          %s792 = sld [smem:[#allocation2 + %s791]]
          %v793 = vstv %s792
          %v794 = vmul.f32 %v772, %v793
          %v795 = vmul.f32 %v773, %v793
          %v796 = vmul.f32 %v774, %v793
          %v797 = vmul.f32 %v775, %v793
          %v802 = vrot.slane %v794, 1
          %v803 = vrot.slane %v795, 1
          %v804 = vrot.slane %v796, 1
          %v805 = vrot.slane %v797, 1
          %v810 = vadd.f32 %v787, %v802
          %v811 = vadd.f32 %v788, %v803
          %v812 = vadd.f32 %v789, %v804
          %v813 = vadd.f32 %v790, %v805
          %s814 = sadd.s32 %s254, 5
          %s815 = sld [smem:[#allocation2 + %s814]]
          %v816 = vstv %s815
          %v817 = vmul.f32 %v772, %v816
          %v818 = vmul.f32 %v773, %v816
          %v819 = vmul.f32 %v774, %v816
          %v820 = vmul.f32 %v775, %v816
          %v825 = vrot.slane %v817, 2
          %v826 = vrot.slane %v818, 2
          %v827 = vrot.slane %v819, 2
          %v828 = vrot.slane %v820, 2
          %v833 = vadd.f32 %v810, %v825
          %v834 = vadd.f32 %v811, %v826
          %v835 = vadd.f32 %v812, %v827
          %v836 = vadd.f32 %v813, %v828
          %s837 = sadd.s32 %s254, 7
          %s838 = sld [smem:[#allocation2 + %s837]]
          %v839 = vstv %s838
          %v840 = vmul.f32 %v772, %v839
          %v841 = vmul.f32 %v773, %v839
          %v842 = vmul.f32 %v774, %v839
          %v843 = vmul.f32 %v775, %v839
          %v848 = vrot.slane %v840, 3
          %v849 = vrot.slane %v841, 3
          %v850 = vrot.slane %v842, 3
          %v851 = vrot.slane %v843, 3
          %v856 = vadd.f32 %v833, %v848
          %v857 = vadd.f32 %v834, %v849
          %v858 = vadd.f32 %v835, %v850
          %v859 = vadd.f32 %v836, %v851
          %s860 = sadd.s32 %s254, 19
          %s861 = sld [smem:[#allocation2 + %s860]]
          %v862 = vstv %s861
          %v863 = vmul.f32 %v773, %v862
          %v864 = vmul.f32 %v774, %v862
          %v865 = vmul.f32 %v775, %v862
          %v866 = vmul.f32 %v776, %v862
          %v867 = vadd.f32 %v856, %v863
          %v868 = vadd.f32 %v857, %v864
          %v869 = vadd.f32 %v858, %v865
          %v870 = vadd.f32 %v859, %v866
          %s871 = sadd.s32 %s254, 21
          %s872 = sld [smem:[#allocation2 + %s871]]
          %v873 = vstv %s872
          %v874 = vmul.f32 %v773, %v873
          %v875 = vmul.f32 %v774, %v873
          %v876 = vmul.f32 %v775, %v873
          %v877 = vmul.f32 %v776, %v873
          %v882 = vrot.slane %v874, 1
          %v883 = vrot.slane %v875, 1
          %v884 = vrot.slane %v876, 1
          %v885 = vrot.slane %v877, 1
          %v890 = vadd.f32 %v867, %v882
          %v891 = vadd.f32 %v868, %v883
          %v892 = vadd.f32 %v869, %v884
          %v893 = vadd.f32 %v870, %v885
          %s894 = sadd.s32 %s254, 23
          %s895 = sld [smem:[#allocation2 + %s894]]
          %v896 = vstv %s895
          %v897 = vmul.f32 %v773, %v896
          %v898 = vmul.f32 %v774, %v896
          %v899 = vmul.f32 %v775, %v896
          %v900 = vmul.f32 %v776, %v896
          %v905 = vrot.slane %v897, 2
          %v906 = vrot.slane %v898, 2
          %v907 = vrot.slane %v899, 2
          %v908 = vrot.slane %v900, 2
          %v913 = vadd.f32 %v890, %v905
          %v914 = vadd.f32 %v891, %v906
          %v915 = vadd.f32 %v892, %v907
          %v916 = vadd.f32 %v893, %v908
          %s917 = sadd.s32 %s254, 25
          %s918 = sld [smem:[#allocation2 + %s917]]
          %v919 = vstv %s918
          %v920 = vmul.f32 %v773, %v919
          %v921 = vmul.f32 %v774, %v919
          %v922 = vmul.f32 %v775, %v919
          %v923 = vmul.f32 %v776, %v919
          %v928 = vrot.slane %v920, 3
          %v929 = vrot.slane %v921, 3
          %v930 = vrot.slane %v922, 3
          %v931 = vrot.slane %v923, 3
          %v936 = vadd.f32 %v913, %v928
          %v937 = vadd.f32 %v914, %v929
          %v938 = vadd.f32 %v915, %v930
          %v939 = vadd.f32 %v916, %v931
          %s940 = sadd.s32 %s254, 37
          %s941 = sld [smem:[#allocation2 + %s940]]
          %v942 = vstv %s941
          %v943 = vmul.f32 %v774, %v942
          %v944 = vmul.f32 %v775, %v942
          %v945 = vmul.f32 %v776, %v942
          %v946 = vmul.f32 %v777, %v942
          %v947 = vadd.f32 %v936, %v943
          %v948 = vadd.f32 %v937, %v944
          %v949 = vadd.f32 %v938, %v945
          %v950 = vadd.f32 %v939, %v946
          %s951 = sadd.s32 %s254, 39
          %s952 = sld [smem:[#allocation2 + %s951]]
          %v953 = vstv %s952
          %v954 = vmul.f32 %v774, %v953
          %v955 = vmul.f32 %v775, %v953
          %v956 = vmul.f32 %v776, %v953
          %v957 = vmul.f32 %v777, %v953
          %v962 = vrot.slane %v954, 1
          %v963 = vrot.slane %v955, 1
          %v964 = vrot.slane %v956, 1
          %v965 = vrot.slane %v957, 1
          %v970 = vadd.f32 %v947, %v962
          %v971 = vadd.f32 %v948, %v963
          %v972 = vadd.f32 %v949, %v964
          %v973 = vadd.f32 %v950, %v965
          %s974 = sadd.s32 %s254, 41
          %s975 = sld [smem:[#allocation2 + %s974]]
          %v976 = vstv %s975
          %v977 = vmul.f32 %v774, %v976
          %v978 = vmul.f32 %v775, %v976
          %v979 = vmul.f32 %v776, %v976
          %v980 = vmul.f32 %v777, %v976
          %v985 = vrot.slane %v977, 2
          %v986 = vrot.slane %v978, 2
          %v987 = vrot.slane %v979, 2
          %v988 = vrot.slane %v980, 2
          %v993 = vadd.f32 %v970, %v985
          %v994 = vadd.f32 %v971, %v986
          %v995 = vadd.f32 %v972, %v987
          %v996 = vadd.f32 %v973, %v988
          %s997 = sadd.s32 %s254, 43
          %s998 = sld [smem:[#allocation2 + %s997]]
          %v999 = vstv %s998
          %v1000 = vmul.f32 %v774, %v999
          %v1001 = vmul.f32 %v775, %v999
          %v1002 = vmul.f32 %v776, %v999
          %v1003 = vmul.f32 %v777, %v999
          %v1008 = vrot.slane %v1000, 3
          %v1009 = vrot.slane %v1001, 3
          %v1010 = vrot.slane %v1002, 3
          %v1011 = vrot.slane %v1003, 3
          %v1016 = vadd.f32 %v993, %v1008
          %v1017 = vadd.f32 %v994, %v1009
          %v1018 = vadd.f32 %v995, %v1010
          %v1019 = vadd.f32 %v996, %v1011
          %s1020 = sadd.s32 %s254, 55
          %s1021 = sld [smem:[#allocation2 + %s1020]]
          %v1022 = vstv %s1021
          %v1023 = vmul.f32 %v775, %v1022
          %v1024 = vmul.f32 %v776, %v1022
          %v1025 = vmul.f32 %v777, %v1022
          %v1026 = vmul.f32 %v778, %v1022
          %v1027 = vadd.f32 %v1016, %v1023
          %v1028 = vadd.f32 %v1017, %v1024
          %v1029 = vadd.f32 %v1018, %v1025
          %v1030 = vadd.f32 %v1019, %v1026
          %s1031 = sadd.s32 %s254, 57
          %s1032 = sld [smem:[#allocation2 + %s1031]]
          %v1033 = vstv %s1032
          %v1034 = vmul.f32 %v775, %v1033
          %v1035 = vmul.f32 %v776, %v1033
          %v1036 = vmul.f32 %v777, %v1033
          %v1037 = vmul.f32 %v778, %v1033
          %v1042 = vrot.slane %v1034, 1
          %v1043 = vrot.slane %v1035, 1
          %v1044 = vrot.slane %v1036, 1
          %v1045 = vrot.slane %v1037, 1
          %v1050 = vadd.f32 %v1027, %v1042
          %v1051 = vadd.f32 %v1028, %v1043
          %v1052 = vadd.f32 %v1029, %v1044
          %v1053 = vadd.f32 %v1030, %v1045
          %s1054 = sadd.s32 %s254, 59
          %s1055 = sld [smem:[#allocation2 + %s1054]]
          %v1056 = vstv %s1055
          %v1057 = vmul.f32 %v775, %v1056
          %v1058 = vmul.f32 %v776, %v1056
          %v1059 = vmul.f32 %v777, %v1056
          %v1060 = vmul.f32 %v778, %v1056
          %v1065 = vrot.slane %v1057, 2
          %v1066 = vrot.slane %v1058, 2
          %v1067 = vrot.slane %v1059, 2
          %v1068 = vrot.slane %v1060, 2
          %v1073 = vadd.f32 %v1050, %v1065
          %v1074 = vadd.f32 %v1051, %v1066
          %v1075 = vadd.f32 %v1052, %v1067
          %v1076 = vadd.f32 %v1053, %v1068
          %s1077 = sadd.s32 %s254, 61
          %s1078 = sld [smem:[#allocation2 + %s1077]]
          %v1079 = vstv %s1078
          %v1080 = vmul.f32 %v775, %v1079
          %v1081 = vmul.f32 %v776, %v1079
          %v1082 = vmul.f32 %v777, %v1079
          %v1083 = vmul.f32 %v778, %v1079
          %v1088 = vrot.slane %v1080, 3
          %v1089 = vrot.slane %v1081, 3
          %v1090 = vrot.slane %v1082, 3
          %v1091 = vrot.slane %v1083, 3
          %v1096 = vadd.f32 %v1073, %v1088
          %v1097 = vadd.f32 %v1074, %v1089
          %v1098 = vadd.f32 %v1075, %v1090
          %v1099 = vadd.f32 %v1076, %v1091
          %s1100 = sadd.s32 %s254, 73
          %s1101 = sld [smem:[#allocation2 + %s1100]]
          %v1102 = vstv %s1101
          %v1103 = vmul.f32 %v776, %v1102
          %v1104 = vmul.f32 %v777, %v1102
          %v1105 = vmul.f32 %v778, %v1102
          %v1106 = vmul.f32 %v779, %v1102
          %v1107 = vadd.f32 %v1096, %v1103
          %v1108 = vadd.f32 %v1097, %v1104
          %v1109 = vadd.f32 %v1098, %v1105
          %v1110 = vadd.f32 %v1099, %v1106
          %s1111 = sadd.s32 %s254, 75
          %s1112 = sld [smem:[#allocation2 + %s1111]]
          %v1113 = vstv %s1112
          %v1114 = vmul.f32 %v776, %v1113
          %v1115 = vmul.f32 %v777, %v1113
          %v1116 = vmul.f32 %v778, %v1113
          %v1117 = vmul.f32 %v779, %v1113
          %v1122 = vrot.slane %v1114, 1
          %v1123 = vrot.slane %v1115, 1
          %v1124 = vrot.slane %v1116, 1
          %v1125 = vrot.slane %v1117, 1
          %v1130 = vadd.f32 %v1107, %v1122
          %v1131 = vadd.f32 %v1108, %v1123
          %v1132 = vadd.f32 %v1109, %v1124
          %v1133 = vadd.f32 %v1110, %v1125
          %s1134 = sadd.s32 %s254, 77
          %s1135 = sld [smem:[#allocation2 + %s1134]]
          %v1136 = vstv %s1135
          %v1137 = vmul.f32 %v776, %v1136
          %v1138 = vmul.f32 %v777, %v1136
          %v1139 = vmul.f32 %v778, %v1136
          %v1140 = vmul.f32 %v779, %v1136
          %v1145 = vrot.slane %v1137, 2
          %v1146 = vrot.slane %v1138, 2
          %v1147 = vrot.slane %v1139, 2
          %v1148 = vrot.slane %v1140, 2
          %v1153 = vadd.f32 %v1130, %v1145
          %v1154 = vadd.f32 %v1131, %v1146
          %v1155 = vadd.f32 %v1132, %v1147
          %v1156 = vadd.f32 %v1133, %v1148
          %s1157 = sadd.s32 %s254, 79
          %s1158 = sld [smem:[#allocation2 + %s1157]]
          %v1159 = vstv %s1158
          %v1160 = vmul.f32 %v776, %v1159
          %v1161 = vmul.f32 %v777, %v1159
          %v1162 = vmul.f32 %v778, %v1159
          %v1163 = vmul.f32 %v779, %v1159
          %v1168 = vrot.slane %v1160, 3
          %v1169 = vrot.slane %v1161, 3
          %v1170 = vrot.slane %v1162, 3
          %v1171 = vrot.slane %v1163, 3
          %v1176 = vadd.f32 %v1153, %v1168
          %v1177 = vadd.f32 %v1154, %v1169
          %v1178 = vadd.f32 %v1155, %v1170
          %v1179 = vadd.f32 %v1156, %v1171
          %s1180 = sadd.s32 %s241, 2
          %s1181 = smul.u32 %s1180, 64
          %s1182 = scalar_lea.vmem %s222, %s1181
          %v1183 = vld [vmem:[%s1182] sm:$0xff]
          %v1184 = vld [vmem:[%s1182 + $0x8] sm:$0xff]
          %v1185 = vld [vmem:[%s1182 + $0x10] sm:$0xff]
          %v1186 = vld [vmem:[%s1182 + $0x18] sm:$0xff]
          %v1187 = vld [vmem:[%s1182 + $0x20] sm:$0xff]
          %v1188 = vld [vmem:[%s1182 + $0x28] sm:$0xff]
          %v1189 = vld [vmem:[%s1182 + $0x30] sm:$0xff]
          %s1190 = sadd.s32 %s254, 9
          %s1191 = sld [smem:[#allocation2 + %s1190]]
          %v1192 = vstv %s1191
          %v1193 = vmul.f32 %v1183, %v1192
          %v1194 = vmul.f32 %v1184, %v1192
          %v1195 = vmul.f32 %v1185, %v1192
          %v1196 = vmul.f32 %v1186, %v1192
          %v1197 = vadd.f32 %v1176, %v1193
          %v1198 = vadd.f32 %v1177, %v1194
          %v1199 = vadd.f32 %v1178, %v1195
          %v1200 = vadd.f32 %v1179, %v1196
          %s1201 = sadd.s32 %s254, 11
          %s1202 = sld [smem:[#allocation2 + %s1201]]
          %v1203 = vstv %s1202
          %v1204 = vmul.f32 %v1183, %v1203
          %v1205 = vmul.f32 %v1184, %v1203
          %v1206 = vmul.f32 %v1185, %v1203
          %v1207 = vmul.f32 %v1186, %v1203
          %v1212 = vrot.slane %v1204, 1
          %v1213 = vrot.slane %v1205, 1
          %v1214 = vrot.slane %v1206, 1
          %v1215 = vrot.slane %v1207, 1
          %v1220 = vadd.f32 %v1197, %v1212
          %v1221 = vadd.f32 %v1198, %v1213
          %v1222 = vadd.f32 %v1199, %v1214
          %v1223 = vadd.f32 %v1200, %v1215
          %s1224 = sadd.s32 %s254, 13
          %s1225 = sld [smem:[#allocation2 + %s1224]]
          %v1226 = vstv %s1225
          %v1227 = vmul.f32 %v1183, %v1226
          %v1228 = vmul.f32 %v1184, %v1226
          %v1229 = vmul.f32 %v1185, %v1226
          %v1230 = vmul.f32 %v1186, %v1226
          %v1235 = vrot.slane %v1227, 2
          %v1236 = vrot.slane %v1228, 2
          %v1237 = vrot.slane %v1229, 2
          %v1238 = vrot.slane %v1230, 2
          %v1243 = vadd.f32 %v1220, %v1235
          %v1244 = vadd.f32 %v1221, %v1236
          %v1245 = vadd.f32 %v1222, %v1237
          %v1246 = vadd.f32 %v1223, %v1238
          %s1247 = sadd.s32 %s254, 15
          %s1248 = sld [smem:[#allocation2 + %s1247]]
          %v1249 = vstv %s1248
          %v1250 = vmul.f32 %v1183, %v1249
          %v1251 = vmul.f32 %v1184, %v1249
          %v1252 = vmul.f32 %v1185, %v1249
          %v1253 = vmul.f32 %v1186, %v1249
          %v1258 = vrot.slane %v1250, 3
          %v1259 = vrot.slane %v1251, 3
          %v1260 = vrot.slane %v1252, 3
          %v1261 = vrot.slane %v1253, 3
          %v1266 = vadd.f32 %v1243, %v1258
          %v1267 = vadd.f32 %v1244, %v1259
          %v1268 = vadd.f32 %v1245, %v1260
          %v1269 = vadd.f32 %v1246, %v1261
          %s1270 = sadd.s32 %s254, 17
          %s1271 = sld [smem:[#allocation2 + %s1270]]
          %v1272 = vstv %s1271
          %v1273 = vmul.f32 %v1183, %v1272
          %v1274 = vmul.f32 %v1184, %v1272
          %v1275 = vmul.f32 %v1185, %v1272
          %v1276 = vmul.f32 %v1186, %v1272
          %v1281 = vrot.slane %v1273, 4
          %v1282 = vrot.slane %v1274, 4
          %v1283 = vrot.slane %v1275, 4
          %v1284 = vrot.slane %v1276, 4
          %v1289 = vadd.f32 %v1266, %v1281
          %v1290 = vadd.f32 %v1267, %v1282
          %v1291 = vadd.f32 %v1268, %v1283
          %v1292 = vadd.f32 %v1269, %v1284
          %s1293 = sadd.s32 %s254, 27
          %s1294 = sld [smem:[#allocation2 + %s1293]]
          %v1295 = vstv %s1294
          %v1296 = vmul.f32 %v1184, %v1295
          %v1297 = vmul.f32 %v1185, %v1295
          %v1298 = vmul.f32 %v1186, %v1295
          %v1299 = vmul.f32 %v1187, %v1295
          %v1300 = vadd.f32 %v1289, %v1296
          %v1301 = vadd.f32 %v1290, %v1297
          %v1302 = vadd.f32 %v1291, %v1298
          %v1303 = vadd.f32 %v1292, %v1299
          %s1304 = sadd.s32 %s254, 29
          %s1305 = sld [smem:[#allocation2 + %s1304]]
          %v1306 = vstv %s1305
          %v1307 = vmul.f32 %v1184, %v1306
          %v1308 = vmul.f32 %v1185, %v1306
          %v1309 = vmul.f32 %v1186, %v1306
          %v1310 = vmul.f32 %v1187, %v1306
          %v1315 = vrot.slane %v1307, 1
          %v1316 = vrot.slane %v1308, 1
          %v1317 = vrot.slane %v1309, 1
          %v1318 = vrot.slane %v1310, 1
          %v1323 = vadd.f32 %v1300, %v1315
          %v1324 = vadd.f32 %v1301, %v1316
          %v1325 = vadd.f32 %v1302, %v1317
          %v1326 = vadd.f32 %v1303, %v1318
          %s1327 = sadd.s32 %s254, 31
          %s1328 = sld [smem:[#allocation2 + %s1327]]
          %v1329 = vstv %s1328
          %v1330 = vmul.f32 %v1184, %v1329
          %v1331 = vmul.f32 %v1185, %v1329
          %v1332 = vmul.f32 %v1186, %v1329
          %v1333 = vmul.f32 %v1187, %v1329
          %v1338 = vrot.slane %v1330, 2
          %v1339 = vrot.slane %v1331, 2
          %v1340 = vrot.slane %v1332, 2
          %v1341 = vrot.slane %v1333, 2
          %v1346 = vadd.f32 %v1323, %v1338
          %v1347 = vadd.f32 %v1324, %v1339
          %v1348 = vadd.f32 %v1325, %v1340
          %v1349 = vadd.f32 %v1326, %v1341
          %s1350 = sadd.s32 %s254, 33
          %s1351 = sld [smem:[#allocation2 + %s1350]]
          %v1352 = vstv %s1351
          %v1353 = vmul.f32 %v1184, %v1352
          %v1354 = vmul.f32 %v1185, %v1352
          %v1355 = vmul.f32 %v1186, %v1352
          %v1356 = vmul.f32 %v1187, %v1352
          %v1361 = vrot.slane %v1353, 3
          %v1362 = vrot.slane %v1354, 3
          %v1363 = vrot.slane %v1355, 3
          %v1364 = vrot.slane %v1356, 3
          %v1369 = vadd.f32 %v1346, %v1361
          %v1370 = vadd.f32 %v1347, %v1362
          %v1371 = vadd.f32 %v1348, %v1363
          %v1372 = vadd.f32 %v1349, %v1364
          %s1373 = sadd.s32 %s254, 35
          %s1374 = sld [smem:[#allocation2 + %s1373]]
          %v1375 = vstv %s1374
          %v1376 = vmul.f32 %v1184, %v1375
          %v1377 = vmul.f32 %v1185, %v1375
          %v1378 = vmul.f32 %v1186, %v1375
          %v1379 = vmul.f32 %v1187, %v1375
          %v1384 = vrot.slane %v1376, 4
          %v1385 = vrot.slane %v1377, 4
          %v1386 = vrot.slane %v1378, 4
          %v1387 = vrot.slane %v1379, 4
          %v1392 = vadd.f32 %v1369, %v1384
          %v1393 = vadd.f32 %v1370, %v1385
          %v1394 = vadd.f32 %v1371, %v1386
          %v1395 = vadd.f32 %v1372, %v1387
          %s1396 = sadd.s32 %s254, 45
          %s1397 = sld [smem:[#allocation2 + %s1396]]
          %v1398 = vstv %s1397
          %v1399 = vmul.f32 %v1185, %v1398
          %v1400 = vmul.f32 %v1186, %v1398
          %v1401 = vmul.f32 %v1187, %v1398
          %v1402 = vmul.f32 %v1188, %v1398
          %v1403 = vadd.f32 %v1392, %v1399
          %v1404 = vadd.f32 %v1393, %v1400
          %v1405 = vadd.f32 %v1394, %v1401
          %v1406 = vadd.f32 %v1395, %v1402
          %s1407 = sadd.s32 %s254, 47
          %s1408 = sld [smem:[#allocation2 + %s1407]]
          %v1409 = vstv %s1408
          %v1410 = vmul.f32 %v1185, %v1409
          %v1411 = vmul.f32 %v1186, %v1409
          %v1412 = vmul.f32 %v1187, %v1409
          %v1413 = vmul.f32 %v1188, %v1409
          %v1418 = vrot.slane %v1410, 1
          %v1419 = vrot.slane %v1411, 1
          %v1420 = vrot.slane %v1412, 1
          %v1421 = vrot.slane %v1413, 1
          %v1426 = vadd.f32 %v1403, %v1418
          %v1427 = vadd.f32 %v1404, %v1419
          %v1428 = vadd.f32 %v1405, %v1420
          %v1429 = vadd.f32 %v1406, %v1421
          %s1430 = sadd.s32 %s254, 49
          %s1431 = sld [smem:[#allocation2 + %s1430]]
          %v1432 = vstv %s1431
          %v1433 = vmul.f32 %v1185, %v1432
          %v1434 = vmul.f32 %v1186, %v1432
          %v1435 = vmul.f32 %v1187, %v1432
          %v1436 = vmul.f32 %v1188, %v1432
          %v1441 = vrot.slane %v1433, 2
          %v1442 = vrot.slane %v1434, 2
          %v1443 = vrot.slane %v1435, 2
          %v1444 = vrot.slane %v1436, 2
          %v1449 = vadd.f32 %v1426, %v1441
          %v1450 = vadd.f32 %v1427, %v1442
          %v1451 = vadd.f32 %v1428, %v1443
          %v1452 = vadd.f32 %v1429, %v1444
          %s1453 = sadd.s32 %s254, 51
          %s1454 = sld [smem:[#allocation2 + %s1453]]
          %v1455 = vstv %s1454
          %v1456 = vmul.f32 %v1185, %v1455
          %v1457 = vmul.f32 %v1186, %v1455
          %v1458 = vmul.f32 %v1187, %v1455
          %v1459 = vmul.f32 %v1188, %v1455
          %v1464 = vrot.slane %v1456, 3
          %v1465 = vrot.slane %v1457, 3
          %v1466 = vrot.slane %v1458, 3
          %v1467 = vrot.slane %v1459, 3
          %v1472 = vadd.f32 %v1449, %v1464
          %v1473 = vadd.f32 %v1450, %v1465
          %v1474 = vadd.f32 %v1451, %v1466
          %v1475 = vadd.f32 %v1452, %v1467
          %s1476 = sadd.s32 %s254, 53
          %s1477 = sld [smem:[#allocation2 + %s1476]]
          %v1478 = vstv %s1477
          %v1479 = vmul.f32 %v1185, %v1478
          %v1480 = vmul.f32 %v1186, %v1478
          %v1481 = vmul.f32 %v1187, %v1478
          %v1482 = vmul.f32 %v1188, %v1478
          %v1487 = vrot.slane %v1479, 4
          %v1488 = vrot.slane %v1480, 4
          %v1489 = vrot.slane %v1481, 4
          %v1490 = vrot.slane %v1482, 4
          %v1495 = vadd.f32 %v1472, %v1487
          %v1496 = vadd.f32 %v1473, %v1488
          %v1497 = vadd.f32 %v1474, %v1489
          %v1498 = vadd.f32 %v1475, %v1490
          %s1499 = sadd.s32 %s254, 63
          %s1500 = sld [smem:[#allocation2 + %s1499]]
          %v1501 = vstv %s1500
          %v1502 = vmul.f32 %v1186, %v1501
          %v1503 = vmul.f32 %v1187, %v1501
          %v1504 = vmul.f32 %v1188, %v1501
          %v1505 = vmul.f32 %v1189, %v1501
          %v1506 = vadd.f32 %v1495, %v1502
          %v1507 = vadd.f32 %v1496, %v1503
          %v1508 = vadd.f32 %v1497, %v1504
          %v1509 = vadd.f32 %v1498, %v1505
          %s1510 = sadd.s32 %s254, 65
          %s1511 = sld [smem:[#allocation2 + %s1510]]
          %v1512 = vstv %s1511
          %v1513 = vmul.f32 %v1186, %v1512
          %v1514 = vmul.f32 %v1187, %v1512
          %v1515 = vmul.f32 %v1188, %v1512
          %v1516 = vmul.f32 %v1189, %v1512
          %v1521 = vrot.slane %v1513, 1
          %v1522 = vrot.slane %v1514, 1
          %v1523 = vrot.slane %v1515, 1
          %v1524 = vrot.slane %v1516, 1
          %v1529 = vadd.f32 %v1506, %v1521
          %v1530 = vadd.f32 %v1507, %v1522
          %v1531 = vadd.f32 %v1508, %v1523
          %v1532 = vadd.f32 %v1509, %v1524
          %s1533 = sadd.s32 %s254, 67
          %s1534 = sld [smem:[#allocation2 + %s1533]]
          %v1535 = vstv %s1534
          %v1536 = vmul.f32 %v1186, %v1535
          %v1537 = vmul.f32 %v1187, %v1535
          %v1538 = vmul.f32 %v1188, %v1535
          %v1539 = vmul.f32 %v1189, %v1535
          %v1544 = vrot.slane %v1536, 2
          %v1545 = vrot.slane %v1537, 2
          %v1546 = vrot.slane %v1538, 2
          %v1547 = vrot.slane %v1539, 2
          %v1552 = vadd.f32 %v1529, %v1544
          %v1553 = vadd.f32 %v1530, %v1545
          %v1554 = vadd.f32 %v1531, %v1546
          %v1555 = vadd.f32 %v1532, %v1547
          %s1556 = sadd.s32 %s254, 69
          %s1557 = sld [smem:[#allocation2 + %s1556]]
          %v1558 = vstv %s1557
          %v1559 = vmul.f32 %v1186, %v1558
          %v1560 = vmul.f32 %v1187, %v1558
          %v1561 = vmul.f32 %v1188, %v1558
          %v1562 = vmul.f32 %v1189, %v1558
          %v1567 = vrot.slane %v1559, 3
          %v1568 = vrot.slane %v1560, 3
          %v1569 = vrot.slane %v1561, 3
          %v1570 = vrot.slane %v1562, 3
          %v1575 = vadd.f32 %v1552, %v1567
          %v1576 = vadd.f32 %v1553, %v1568
          %v1577 = vadd.f32 %v1554, %v1569
          %v1578 = vadd.f32 %v1555, %v1570
          %s1579 = sadd.s32 %s254, 71
          %s1580 = sld [smem:[#allocation2 + %s1579]]
          %v1581 = vstv %s1580
          %v1582 = vmul.f32 %v1186, %v1581
          %v1583 = vmul.f32 %v1187, %v1581
          %v1584 = vmul.f32 %v1188, %v1581
          %v1585 = vmul.f32 %v1189, %v1581
          %v1590 = vrot.slane %v1582, 4
          %v1591 = vrot.slane %v1583, 4
          %v1592 = vrot.slane %v1584, 4
          %v1593 = vrot.slane %v1585, 4
          %v1598 = vadd.f32 %v1575, %v1590
          %v1599 = vadd.f32 %v1576, %v1591
          %v1600 = vadd.f32 %v1577, %v1592
          %v1601 = vadd.f32 %v1578, %v1593
          %s1602 = sadd.s32 %s241, 3
          %s1603 = smul.u32 %s1602, 64
          %s1604 = scalar_lea.vmem %s222, %s1603
          %v1605 = vld [vmem:[%s1604] sm:$0xff]
          %v1606 = vld [vmem:[%s1604 + $0x8] sm:$0xff]
          %v1607 = vld [vmem:[%s1604 + $0x10] sm:$0xff]
          %v1608 = vld [vmem:[%s1604 + $0x18] sm:$0xff]
          %v1609 = vld [vmem:[%s1604 + $0x20] sm:$0xff]
          %v1610 = vld [vmem:[%s1604 + $0x28] sm:$0xff]
          %v1611 = vld [vmem:[%s1604 + $0x30] sm:$0xff]
          %s1612 = sadd.s32 %s254, 10
          %s1613 = sld [smem:[#allocation2 + %s1612]]
          %v1614 = vstv %s1613
          %v1615 = vmul.f32 %v1605, %v1614
          %v1616 = vmul.f32 %v1606, %v1614
          %v1617 = vmul.f32 %v1607, %v1614
          %v1618 = vmul.f32 %v1608, %v1614
          %v1619 = vadd.f32 %v1598, %v1615
          %v1620 = vadd.f32 %v1599, %v1616
          %v1621 = vadd.f32 %v1600, %v1617
          %v1622 = vadd.f32 %v1601, %v1618
          %s1623 = sadd.s32 %s254, 12
          %s1624 = sld [smem:[#allocation2 + %s1623]]
          %v1625 = vstv %s1624
          %v1626 = vmul.f32 %v1605, %v1625
          %v1627 = vmul.f32 %v1606, %v1625
          %v1628 = vmul.f32 %v1607, %v1625
          %v1629 = vmul.f32 %v1608, %v1625
          %v1634 = vrot.slane %v1626, 1
          %v1635 = vrot.slane %v1627, 1
          %v1636 = vrot.slane %v1628, 1
          %v1637 = vrot.slane %v1629, 1
          %v1642 = vadd.f32 %v1619, %v1634
          %v1643 = vadd.f32 %v1620, %v1635
          %v1644 = vadd.f32 %v1621, %v1636
          %v1645 = vadd.f32 %v1622, %v1637
          %s1646 = sadd.s32 %s254, 14
          %s1647 = sld [smem:[#allocation2 + %s1646]]
          %v1648 = vstv %s1647
          %v1649 = vmul.f32 %v1605, %v1648
          %v1650 = vmul.f32 %v1606, %v1648
          %v1651 = vmul.f32 %v1607, %v1648
          %v1652 = vmul.f32 %v1608, %v1648
          %v1657 = vrot.slane %v1649, 2
          %v1658 = vrot.slane %v1650, 2
          %v1659 = vrot.slane %v1651, 2
          %v1660 = vrot.slane %v1652, 2
          %v1665 = vadd.f32 %v1642, %v1657
          %v1666 = vadd.f32 %v1643, %v1658
          %v1667 = vadd.f32 %v1644, %v1659
          %v1668 = vadd.f32 %v1645, %v1660
          %s1669 = sadd.s32 %s254, 16
          %s1670 = sld [smem:[#allocation2 + %s1669]]
          %v1671 = vstv %s1670
          %v1672 = vmul.f32 %v1605, %v1671
          %v1673 = vmul.f32 %v1606, %v1671
          %v1674 = vmul.f32 %v1607, %v1671
          %v1675 = vmul.f32 %v1608, %v1671
          %v1680 = vrot.slane %v1672, 3
          %v1681 = vrot.slane %v1673, 3
          %v1682 = vrot.slane %v1674, 3
          %v1683 = vrot.slane %v1675, 3
          %v1688 = vadd.f32 %v1665, %v1680
          %v1689 = vadd.f32 %v1666, %v1681
          %v1690 = vadd.f32 %v1667, %v1682
          %v1691 = vadd.f32 %v1668, %v1683
          %s1692 = sadd.s32 %s254, 28
          %s1693 = sld [smem:[#allocation2 + %s1692]]
          %v1694 = vstv %s1693
          %v1695 = vmul.f32 %v1606, %v1694
          %v1696 = vmul.f32 %v1607, %v1694
          %v1697 = vmul.f32 %v1608, %v1694
          %v1698 = vmul.f32 %v1609, %v1694
          %v1699 = vadd.f32 %v1688, %v1695
          %v1700 = vadd.f32 %v1689, %v1696
          %v1701 = vadd.f32 %v1690, %v1697
          %v1702 = vadd.f32 %v1691, %v1698
          %s1703 = sadd.s32 %s254, 30
          %s1704 = sld [smem:[#allocation2 + %s1703]]
          %v1705 = vstv %s1704
          %v1706 = vmul.f32 %v1606, %v1705
          %v1707 = vmul.f32 %v1607, %v1705
          %v1708 = vmul.f32 %v1608, %v1705
          %v1709 = vmul.f32 %v1609, %v1705
          %v1714 = vrot.slane %v1706, 1
          %v1715 = vrot.slane %v1707, 1
          %v1716 = vrot.slane %v1708, 1
          %v1717 = vrot.slane %v1709, 1
          %v1722 = vadd.f32 %v1699, %v1714
          %v1723 = vadd.f32 %v1700, %v1715
          %v1724 = vadd.f32 %v1701, %v1716
          %v1725 = vadd.f32 %v1702, %v1717
          %s1726 = sadd.s32 %s254, 32
          %s1727 = sld [smem:[#allocation2 + %s1726]]
          %v1728 = vstv %s1727
          %v1729 = vmul.f32 %v1606, %v1728
          %v1730 = vmul.f32 %v1607, %v1728
          %v1731 = vmul.f32 %v1608, %v1728
          %v1732 = vmul.f32 %v1609, %v1728
          %v1737 = vrot.slane %v1729, 2
          %v1738 = vrot.slane %v1730, 2
          %v1739 = vrot.slane %v1731, 2
          %v1740 = vrot.slane %v1732, 2
          %v1745 = vadd.f32 %v1722, %v1737
          %v1746 = vadd.f32 %v1723, %v1738
          %v1747 = vadd.f32 %v1724, %v1739
          %v1748 = vadd.f32 %v1725, %v1740
          %s1749 = sadd.s32 %s254, 34
          %s1750 = sld [smem:[#allocation2 + %s1749]]
          %v1751 = vstv %s1750
          %v1752 = vmul.f32 %v1606, %v1751
          %v1753 = vmul.f32 %v1607, %v1751
          %v1754 = vmul.f32 %v1608, %v1751
          %v1755 = vmul.f32 %v1609, %v1751
          %v1760 = vrot.slane %v1752, 3
          %v1761 = vrot.slane %v1753, 3
          %v1762 = vrot.slane %v1754, 3
          %v1763 = vrot.slane %v1755, 3
          %v1768 = vadd.f32 %v1745, %v1760
          %v1769 = vadd.f32 %v1746, %v1761
          %v1770 = vadd.f32 %v1747, %v1762
          %v1771 = vadd.f32 %v1748, %v1763
          %s1772 = sadd.s32 %s254, 46
          %s1773 = sld [smem:[#allocation2 + %s1772]]
          %v1774 = vstv %s1773
          %v1775 = vmul.f32 %v1607, %v1774
          %v1776 = vmul.f32 %v1608, %v1774
          %v1777 = vmul.f32 %v1609, %v1774
          %v1778 = vmul.f32 %v1610, %v1774
          %v1779 = vadd.f32 %v1768, %v1775
          %v1780 = vadd.f32 %v1769, %v1776
          %v1781 = vadd.f32 %v1770, %v1777
          %v1782 = vadd.f32 %v1771, %v1778
          %s1783 = sadd.s32 %s254, 48
          %s1784 = sld [smem:[#allocation2 + %s1783]]
          %v1785 = vstv %s1784
          %v1786 = vmul.f32 %v1607, %v1785
          %v1787 = vmul.f32 %v1608, %v1785
          %v1788 = vmul.f32 %v1609, %v1785
          %v1789 = vmul.f32 %v1610, %v1785
          %v1794 = vrot.slane %v1786, 1
          %v1795 = vrot.slane %v1787, 1
          %v1796 = vrot.slane %v1788, 1
          %v1797 = vrot.slane %v1789, 1
          %v1802 = vadd.f32 %v1779, %v1794
          %v1803 = vadd.f32 %v1780, %v1795
          %v1804 = vadd.f32 %v1781, %v1796
          %v1805 = vadd.f32 %v1782, %v1797
          %s1806 = sadd.s32 %s254, 50
          %s1807 = sld [smem:[#allocation2 + %s1806]]
          %v1808 = vstv %s1807
          %v1809 = vmul.f32 %v1607, %v1808
          %v1810 = vmul.f32 %v1608, %v1808
          %v1811 = vmul.f32 %v1609, %v1808
          %v1812 = vmul.f32 %v1610, %v1808
          %v1817 = vrot.slane %v1809, 2
          %v1818 = vrot.slane %v1810, 2
          %v1819 = vrot.slane %v1811, 2
          %v1820 = vrot.slane %v1812, 2
          %v1825 = vadd.f32 %v1802, %v1817
          %v1826 = vadd.f32 %v1803, %v1818
          %v1827 = vadd.f32 %v1804, %v1819
          %v1828 = vadd.f32 %v1805, %v1820
          %s1829 = sadd.s32 %s254, 52
          %s1830 = sld [smem:[#allocation2 + %s1829]]
          %v1831 = vstv %s1830
          %v1832 = vmul.f32 %v1607, %v1831
          %v1833 = vmul.f32 %v1608, %v1831
          %v1834 = vmul.f32 %v1609, %v1831
          %v1835 = vmul.f32 %v1610, %v1831
          %v1840 = vrot.slane %v1832, 3
          %v1841 = vrot.slane %v1833, 3
          %v1842 = vrot.slane %v1834, 3
          %v1843 = vrot.slane %v1835, 3
          %v1848 = vadd.f32 %v1825, %v1840
          %v1849 = vadd.f32 %v1826, %v1841
          %v1850 = vadd.f32 %v1827, %v1842
          %v1851 = vadd.f32 %v1828, %v1843
          %s1852 = sadd.s32 %s254, 64
          %s1853 = sld [smem:[#allocation2 + %s1852]]
          %v1854 = vstv %s1853
          %v1855 = vmul.f32 %v1608, %v1854
          %v1856 = vmul.f32 %v1609, %v1854
          %v1857 = vmul.f32 %v1610, %v1854
          %v1858 = vmul.f32 %v1611, %v1854
          %v1859 = vadd.f32 %v1848, %v1855
          %v1860 = vadd.f32 %v1849, %v1856
          %v1861 = vadd.f32 %v1850, %v1857
          %v1862 = vadd.f32 %v1851, %v1858
          %s1863 = sadd.s32 %s254, 66
          %s1864 = sld [smem:[#allocation2 + %s1863]]
          %v1865 = vstv %s1864
          %v1866 = vmul.f32 %v1608, %v1865
          %v1867 = vmul.f32 %v1609, %v1865
          %v1868 = vmul.f32 %v1610, %v1865
          %v1869 = vmul.f32 %v1611, %v1865
          %v1874 = vrot.slane %v1866, 1
          %v1875 = vrot.slane %v1867, 1
          %v1876 = vrot.slane %v1868, 1
          %v1877 = vrot.slane %v1869, 1
          %v1882 = vadd.f32 %v1859, %v1874
          %v1883 = vadd.f32 %v1860, %v1875
          %v1884 = vadd.f32 %v1861, %v1876
          %v1885 = vadd.f32 %v1862, %v1877
          %s1886 = sadd.s32 %s254, 68
          %s1887 = sld [smem:[#allocation2 + %s1886]]
          %v1888 = vstv %s1887
          %v1889 = vmul.f32 %v1608, %v1888
          %v1890 = vmul.f32 %v1609, %v1888
          %v1891 = vmul.f32 %v1610, %v1888
          %v1892 = vmul.f32 %v1611, %v1888
          %v1897 = vrot.slane %v1889, 2
          %v1898 = vrot.slane %v1890, 2
          %v1899 = vrot.slane %v1891, 2
          %v1900 = vrot.slane %v1892, 2
          %v1905 = vadd.f32 %v1882, %v1897
          %v1906 = vadd.f32 %v1883, %v1898
          %v1907 = vadd.f32 %v1884, %v1899
          %v1908 = vadd.f32 %v1885, %v1900
          %s1909 = sadd.s32 %s254, 70
          %s1910 = sld [smem:[#allocation2 + %s1909]]
          %v1911 = vstv %s1910
          %v1912 = vmul.f32 %v1608, %v1911
          %v1913 = vmul.f32 %v1609, %v1911
          %v1914 = vmul.f32 %v1610, %v1911
          %v1915 = vmul.f32 %v1611, %v1911
          %v1920 = vrot.slane %v1912, 3
          %v1921 = vrot.slane %v1913, 3
          %v1922 = vrot.slane %v1914, 3
          %v1923 = vrot.slane %v1915, 3
          %v1928 = vadd.f32 %v1905, %v1920
          %v1929 = vadd.f32 %v1906, %v1921
          %v1930 = vadd.f32 %v1907, %v1922
          %v1931 = vadd.f32 %v1908, %v1923
          %v1932 = vadd.f32 %v237, %v1928
          %v1933 = vadd.f32 %v238, %v1929
          %v1934 = vadd.f32 %v239, %v1930
          %v1935 = vadd.f32 %v240, %v1931
        $region45: #{tpu_custom_call.1} parent=31 // loop_footer
          %s236 = sadd.s32 1, %s232
        $region46: #{tpu_custom_call.1} parent=31 // loop_footer_branch
          %231 = sbr.rel target = $region42
        $region47: #{tpu_custom_call.1} parent=31 // loop_exit
          _
        %s1936 = sld [smem:[#allocation4 + %s20]]
        %v1937 = vstv %s1936
        %v1938 = vadd.f32 %v237, %v1937
        %v1939 = vadd.f32 %v238, %v1937
        %v1940 = vadd.f32 %v239, %v1937
        %v1941 = vadd.f32 %v240, %v1937
        %vm1942 = vcmask 11264
        %1943 = vst.msk [vmem:[%s230] sm:$0xf] %vm1942, %v1938
        %1944 = vst.msk [vmem:[%s230 + $0x4] sm:$0xf] %vm1942, %v1939
        %1945 = vst.msk [vmem:[%s230 + $0x8] sm:$0xf] %vm1942, %v1940
        %1946 = vst.msk [vmem:[%s230 + $0xc] sm:$0xf] %vm1942, %v1941
        %p1947 = scmp.lt.s32.totalorder %s20, 1
        %s1948 = scalar_select %p1947, %s20, 1
        %p1949 = scmp.lt.s32.totalorder %s21, 0
        %s1950 = scalar_select %p1949, %s21, 0
        %s1951 = smul.addr %s1948, 4
        %s1952 = sadd.s32 %s1950, %s1951
        %s1953 = smul.addr %s1952, 4
        %s1954 = scalar_lea.vmem %s3, %s1953
        // Predicated region
        $region48: #{tpu_custom_call.1} parent=31 // pred_check
          %p1955 = pneg %p118
        $region49: #{tpu_custom_call.1} parent=31 // pred_check_branch
          %1957 = sbr.rel (%p1955) target = $region51
        $region50: #{tpu_custom_call.1} parent=31 // pred_region
          _
        $region51: #{tpu_custom_call.1} parent=31 // pred_fallthru
          _
      $region32: #{tpu_custom_call.1} parent=5 // pred_fallthru
        _
      %p1958 = scmp.le.s32.totalorder 2, %s11
      // Predicated region
      $region52: #{tpu_custom_call.1} parent=5 // pred_check
        %p1959 = pneg %p1958
      $region53: #{tpu_custom_call.1} parent=5 // pred_check_branch
        %1961 = sbr.rel (%p1959) target = $region55
      $region54: #{tpu_custom_call.1} parent=5 // pred_region
        %s1962 = ssub.s32 %s11, 2
        // Predicated region
        $region56: #{tpu_custom_call.1} parent=54 // pred_check
          %p1963 = pneg %p124
        $region57: #{tpu_custom_call.1} parent=54 // pred_check_branch
          %1965 = sbr.rel (%p1963) target = $region59
        $region58: #{tpu_custom_call.1} parent=54 // pred_region
          %p1966 = scmp.lt.s32.totalorder %s22, 1
          %s1967 = scalar_select %p1966, %s22, 1
          %p1968 = scmp.lt.s32.totalorder %s23, 0
          %s1969 = scalar_select %p1968, %s23, 0
          %s1970 = smul.addr %s1967, 4
          %s1971 = sadd.s32 %s1969, %s1970
          %s1972 = smul.addr %s1971, 4
          %s1973 = scalar_lea.vmem %s3, %s1972
        $region59: #{tpu_custom_call.1} parent=54 // pred_fallthru
          _
      $region55: #{tpu_custom_call.1} parent=5 // pred_fallthru
        _
    $region6: #{tpu_custom_call.1} parent=1 // loop_footer
      %s15 = sadd.s32 1, %s11
    $region7: #{tpu_custom_call.1} parent=1 // loop_footer_branch
      %10 = sbr.rel target = $region3
    $region8: #{tpu_custom_call.1} parent=1 // loop_exit
      _
    %1974 = vsyncpa [#allocation3], 1
    %s1975 = scalar_lea.sflag [#allocation3], 1
    %1976 = vsyncpa %s1975, 1
    %1977 = vsyncpa [#allocation5], 1

</llo_original>
